<compile_context>
chip_gen: v7x
topology: tpu7x:2x2x1
jax: 0.10.0
libtpu: 0.0.40
codegen_flags: <defaults>
</compile_context>

<pallas_src>
import numpy as np
import jax
import jax.numpy as jnp
from jax.experimental import pallas as pl
from jax.experimental.pallas import tpu as pltpu


# ---------------------------------------------------------------------------
# Pallas kernel factory: grid = (batch, time); one grid step = one time step
# of one batch element's ConvLSTM recurrence.
# ---------------------------------------------------------------------------
def make_convlstm_kernel(M, H, W, P_pad):
    n_taps = 9
    # Row shift for tap k = kh*3 + kw acting on rows r = i*W + j:
    # source row = r + delta_k, delta_k = (kh-1)*W + (kw-1).
    # jnp/np.roll semantics: out[r] = h[r - shift]  =>  shift = -delta.
    shifts = tuple((-((kh - 1) * W + (kw - 1))) % P_pad
                   for kh in range(3) for kw in range(3))

    def kernel(gx_ref, mask_ref, wh_ref, fcw_ref, fcb_ref, avg_ref,
               feats_ref, feats1_ref, h_scr, c_scr):
        t = pl.program_id(1)

        # State init at t == 0 (matches torch.zeros init; re-runs per batch).
        @pl.when(t == 0)
        def _():
            h_scr[...] = jnp.zeros_like(h_scr)
            c_scr[...] = jnp.zeros_like(c_scr)

        # Hoisted x contribution (bias already folded in the wrapper).
        gates = gx_ref[...].astype(jnp.float32)                     # [P_pad, 4M]

        # h path: 9 static sublane rolls * boundary masks, each a K=M matmul
        # accumulated into the f32 gate tile.
        h = h_scr[...]                                              # [P_pad, M] f32
        for k in range(n_taps):
            s = shifts[k]
            hk = pltpu.roll(h, shift=s, axis=0) if s else h
            hk = hk * mask_ref[k]                                   # [P_pad,1] bcast
            gates = gates + jnp.dot(hk.astype(jnp.bfloat16), wh_ref[k],
                                    preferred_element_type=jnp.float32)

        # Full-width nonlinearities (2 EUP passes), then gate slices
        # [i | f | c~ | o], each of width M.
        sig = jax.nn.sigmoid(gates)
        tnh = jnp.tanh(gates)
        i_g = sig[:, 0 * M:1 * M]
        f_g = sig[:, 1 * M:2 * M]
        g_g = tnh[:, 2 * M:3 * M]
        o_g = sig[:, 3 * M:4 * M]

        c_new = g_g * i_g + c_scr[...] * f_g
        h_new = o_g * jnp.tanh(c_new)
        c_scr[...] = c_new
        h_scr[...] = h_new

        # Final time step: AvgPool2d(7) over the cell state (as a matmul) + FC.
        @pl.when(t == pl.num_programs(1) - 1)
        def _():
            feats1 = jnp.dot(avg_ref[...], c_new,
                             preferred_element_type=jnp.float32)    # [1, M]
            feats1_ref[...] = feats1.astype(feats1_ref.dtype)
            logits = jnp.dot(feats1, fcw_ref[...],
                             preferred_element_type=jnp.float32) + fcb_ref[...]
            feats_ref[...] = logits.astype(feats_ref.dtype)

    return kernel


# ---------------------------------------------------------------------------
# Wrapper / glue.
# ---------------------------------------------------------------------------
def precompute_x_gates(x_seq, wx_cat, bx, P_pad):
    """[T, N, C, H, W] -> bf16 [N, T, P_pad, 4M] pre-activation x-gates.

    The 3x3/pad=1 im2col + Wx matmul + bias does not depend on the recurrence,
    so it is hoisted out of the kernel and computed once for all timesteps by
    XLA.  Padded rows are added AFTER the bias, so they are exactly zero (keeps
    the padded h/c state exactly zero inside the kernel)."""
    T, N, C, H, W = x_seq.shape
    P = H * W
    x_nhwc = jnp.transpose(x_seq, (0, 1, 3, 4, 2))                  # [T,N,H,W,C]
    xp = jnp.pad(x_nhwc, ((0, 0), (0, 0), (1, 1), (1, 1), (0, 0)))
    taps = [xp[:, :, kh:kh + H, kw:kw + W, :]
            for kh in range(3) for kw in range(3)]
    patches = jnp.stack(taps, axis=4).reshape(T, N, P, 9 * C)       # [T,N,P,9C]
    gx = jnp.einsum("tnpc,cg->tnpg", patches.astype(jnp.bfloat16), wx_cat,
                    preferred_element_type=jnp.float32) + bx        # [T,N,P,4M]
    gx = jnp.transpose(gx, (1, 0, 2, 3))                            # [N,T,P,4M]
    gx = jnp.pad(gx, ((0, 0), (0, 0), (0, P_pad - P), (0, 0)))      # zero rows
    return gx.astype(jnp.bfloat16)


def init_params(key, C, M, num_classes, H, W):
    P = H * W
    P_pad = ((P + 15) // 16) * 16                      # bf16 sublane packing
    ncls_pad = ((num_classes + 127) // 128) * 128      # unmasked final store

    k1, k2, k3, k4, k5 = jax.random.split(key, 5)
    # PyTorch-style conv/linear weights (gate order: i, f, c~, o).
    w_x = jax.random.normal(k1, (4, M, C, 3, 3), jnp.float32) * 0.05   # OIHW/gate
    b_x = jax.random.normal(k2, (4, M), jnp.float32) * 0.05
    w_h = jax.random.normal(k3, (4, M, M, 3, 3), jnp.float32) * 0.05   # no bias
    fc_w = jax.random.normal(k4, (num_classes, M), jnp.float32) * 0.05
    fc_b = jax.random.normal(k5, (num_classes,), jnp.float32) * 0.05

    # x-path im2col weights (used only in the wrapper): rows tap-major /
    # channel-minor, columns gate-major [i|f|c~|o] * M.
    wx_cat = jnp.transpose(w_x, (3, 4, 2, 0, 1)).reshape(9 * C, 4 * M)
    # h-path weights per tap for the in-kernel accumulation: [9, M, 4M].
    wh3 = jnp.transpose(w_h, (3, 4, 2, 0, 1)).reshape(9, M, 4 * M)
    bx = b_x.reshape(4 * M)

    # Classifier in lane-padded layout (unmasked final stores).
    fcw_p = jnp.zeros((M, ncls_pad), jnp.float32).at[:, :num_classes].set(fc_w.T)
    fcb_p = jnp.zeros((1, ncls_pad), jnp.float32).at[0, :num_classes].set(fc_b)

    # AvgPool2d(7) over the P real rows, as a constant [1, P_pad] averaging row.
    avg = np.zeros((1, P_pad), np.float32)
    avg[0, :P] = 1.0 / P

    # Per-tap 0/1 validity masks (3x3 / pad=1 boundary handling); padded rows
    # (>= P) are always invalid.
    mask = np.zeros((9, P_pad, 1), np.float32)
    for kh in range(3):
        for kw in range(3):
            k = kh * 3 + kw
            for i in range(H):
                for j in range(W):
                    si, sj = i + kh - 1, j + kw - 1
                    if 0 <= si < H and 0 <= sj < W:
                        mask[k, i * W + j, 0] = 1.0

    params = dict(wx=wx_cat.astype(jnp.bfloat16), bx=bx,
                  wh=wh3.astype(jnp.bfloat16),
                  fcw=fcw_p, fcb=fcb_p,
                  avg=jnp.asarray(avg), mask=jnp.asarray(mask),
                  p_pad=P_pad, ncls_pad=ncls_pad)
    ref_params = dict(w_x=w_x, b_x=b_x, w_h=w_h, fc_w=fc_w, fc_b=fc_b)
    return params, ref_params


def convlstm_forward(x_seq, params, num_classes):
    """x_seq: [T, N, C, H, W] (NCHW backbone features over time)."""
    T, N, C, H, W = x_seq.shape
    P_pad = params["p_pad"]
    ncls_pad = params["ncls_pad"]
    M = params["wh"].shape[1]
    M4 = 4 * M

    gx = precompute_x_gates(x_seq, params["wx"], params["bx"], P_pad)

    kernel = make_convlstm_kernel(M, H, W, P_pad)
    const = dict(pipeline_mode=pl.Buffered(1))   # constant-index blocks: 1 buffer

    grid_spec = pltpu.PrefetchScalarGridSpec(
        num_scalar_prefetch=0,
        grid=(N, T),                             # batch (parallel), time (sequential)
        in_specs=[
            pl.BlockSpec((None, None, P_pad, M4), lambda b, t: (b, t, 0, 0)),   # x gates
            pl.BlockSpec((9, P_pad, 1), lambda b, t: (0, 0, 0), **const),       # tap masks
            pl.BlockSpec((9, M, M4), lambda b, t: (0, 0, 0), **const),          # Wh per tap
            pl.BlockSpec((M, ncls_pad), lambda b, t: (0, 0), **const),          # fc weight
            pl.BlockSpec((1, ncls_pad), lambda b, t: (0, 0), **const),          # fc bias
            pl.BlockSpec((1, P_pad), lambda b, t: (0, 0), **const),             # avgpool row
        ],
        out_specs=[
            pl.BlockSpec((None, 1, ncls_pad), lambda b, t: (b, 0, 0)),          # feats
            pl.BlockSpec((None, 1, M), lambda b, t: (b, 0, 0)),                 # feats1
        ],
        scratch_shapes=[
            pltpu.VMEM((P_pad, M), jnp.float32),                                # h state
            pltpu.VMEM((P_pad, M), jnp.float32),                                # c state
        ],
    )

    feats_pad, feats1 = pl.pallas_call(
        kernel,
        out_shape=(jax.ShapeDtypeStruct((N, 1, ncls_pad), jnp.float32),
                   jax.ShapeDtypeStruct((N, 1, M), jnp.float32)),
        grid_spec=grid_spec,
        compiler_params=pltpu.CompilerParams(
            dimension_semantics=("parallel", "arbitrary"),   # batch || , time sequential
            vmem_limit_bytes=48 * 1024 * 1024),
    )(gx, params["mask"], params["wh"], params["fcw"], params["fcb"],
      params["avg"])

    feats = feats_pad.reshape(N, ncls_pad)[:, :num_classes]
    return feats, feats1.reshape(N, M)


# ---------------------------------------------------------------------------
# Pure-JAX reference (mirrors MyConvLSTMCell + avgpool + fc semantics, f32).
# ---------------------------------------------------------------------------
def reference_forward(x_seq, ref_params, M):
    T, N, C, H, W = x_seq.shape
    h = jnp.zeros((N, M, H, W), jnp.float32)
    c = jnp.zeros_like(h)

    def conv(inp, w, b=None):
        out = jax.lax.conv_general_dilated(
            inp, w, (1, 1), ((1, 1), (1, 1)),
            dimension_numbers=("NCHW", "OIHW", "NCHW"))
        if b is not None:
            out = out + b[None, :, None, None]
        return out

    wx, bx, wh = ref_params["w_x"], ref_params["b_x"], ref_params["w_h"]
    for t in range(T):
        xt = x_seq[t]
        it = jax.nn.sigmoid(conv(xt, wx[0], bx[0]) + conv(h, wh[0]))
        ft = jax.nn.sigmoid(conv(xt, wx[1], bx[1]) + conv(h, wh[1]))
        ct_tilde = jnp.tanh(conv(xt, wx[2], bx[2]) + conv(h, wh[2]))
        c = ct_tilde * it + c * ft
        ot = jax.nn.sigmoid(conv(xt, wx[3], bx[3]) + conv(h, wh[3]))
        h = ot * jnp.tanh(c)

    feats1 = jnp.mean(c, axis=(2, 3))                        # AvgPool2d(7) -> [N, M]
    feats = feats1 @ ref_params["fc_w"].T + ref_params["fc_b"]
    return feats, feats1


if __name__ == "__main__":
    # Small shapes consistent with the module's forward:
    # seq=4, batch=2, feature channels=64 (stand-in for ResNet34's 512),
    # spatial 7x7, mem_size=32, num_classes=61.
    T, N, C, H, W = 4, 2, 64, 7, 7
    MEM_SIZE, NUM_CLASSES = 32, 61

    key = jax.random.PRNGKey(0)
    kx, kp = jax.random.split(key)
    x_seq = jax.random.normal(kx, (T, N, C, H, W), jnp.float32)
    params, ref_params = init_params(kp, C, MEM_SIZE, NUM_CLASSES, H, W)

    feats, feats1 = convlstm_forward(x_seq, params, NUM_CLASSES)
    jax.block_until_ready((feats, feats1))

    ref_feats, ref_feats1 = reference_forward(x_seq, ref_params, MEM_SIZE)
    assert feats.shape == (N, NUM_CLASSES) and feats1.shape == (N, MEM_SIZE)
    # bf16 MXU inputs with f32 accumulation -> loose-but-meaningful tolerance.
    assert jnp.allclose(feats1, ref_feats1, atol=5e-2, rtol=5e-2), (
        float(jnp.max(jnp.abs(feats1 - ref_feats1))))
    assert jnp.allclose(feats, ref_feats, atol=5e-2, rtol=5e-2), (
        float(jnp.max(jnp.abs(feats - ref_feats))))

    print("KERNEL_OK")
</pallas_src>

<mosaic_0001>
module attributes {stable_mosaic.version = 11 : i64} {
  func.func @kernel(%arg0: i32, %arg1: i32, %arg2: memref<1x1x64x128xbf16, #tpu.memory_space<vmem>>, %arg3: memref<9x64x1xf32, #tpu.memory_space<vmem>>, %arg4: memref<9x32x128xbf16, #tpu.memory_space<vmem>>, %arg5: memref<32x128xf32, #tpu.memory_space<vmem>>, %arg6: memref<1x128xf32, #tpu.memory_space<vmem>>, %arg7: memref<1x64xf32, #tpu.memory_space<vmem>>, %arg8: memref<1x1x128xf32, #tpu.memory_space<vmem>>, %arg9: memref<1x1x32xf32, #tpu.memory_space<vmem>>, %arg10: memref<64x32xf32, #tpu.memory_space<vmem>>, %arg11: memref<64x32xf32, #tpu.memory_space<vmem>>) attributes {dimension_semantics = [#tpu.dimension_semantics<parallel>, #tpu.dimension_semantics<arbitrary>], iteration_bounds = array<i64: 2, 4>, scalar_prefetch = 0 : i64, scratch_operands = 2 : i64, tpu.core_type = #tpu.core_type<tc>, window_params = [{transform_indices = @transform_0, window_bounds = array<i64: 1, 1, 64, 128>}, {pipeline_mode = #tpu.pipeline_mode<synchronous>, transform_indices = @transform_1, window_bounds = array<i64: 9, 64, 1>}, {pipeline_mode = #tpu.pipeline_mode<synchronous>, transform_indices = @transform_2, window_bounds = array<i64: 9, 32, 128>}, {pipeline_mode = #tpu.pipeline_mode<synchronous>, transform_indices = @transform_3, window_bounds = array<i64: 32, 128>}, {pipeline_mode = #tpu.pipeline_mode<synchronous>, transform_indices = @transform_4, window_bounds = array<i64: 1, 128>}, {pipeline_mode = #tpu.pipeline_mode<synchronous>, transform_indices = @transform_5, window_bounds = array<i64: 1, 64>}, {transform_indices = @transform_6, window_bounds = array<i64: 1, 1, 128>}, {transform_indices = @transform_7, window_bounds = array<i64: 1, 1, 32>}]} {
    %c0_i32 = arith.constant 0 : i32
    %0 = arith.cmpi eq, %arg1, %c0_i32 : i32
    %1 = arith.extui %0 : i1 to i32
    %c0_i32_0 = arith.constant 0 : i32
    %2 = arith.cmpi ne, %1, %c0_i32_0 : i32
    scf.if %2 {
      %cst_68 = arith.constant 0.000000e+00 : f32
      %117 = vector.broadcast %cst_68 : f32 to vector<64x32xf32>
      %c0_69 = arith.constant 0 : index
      %c0_70 = arith.constant 0 : index
      %118 = vector.load %arg10[%c0_69, %c0_70] : memref<64x32xf32, #tpu.memory_space<vmem>>, vector<64x32xf32>
      tpu.vector_store %arg10[%c0_69, %c0_70], %117 {strides = array<i32>} : memref<64x32xf32, #tpu.memory_space<vmem>>, vector<64x32xf32>,
      %cst_71 = arith.constant 0.000000e+00 : f32
      %119 = vector.broadcast %cst_71 : f32 to vector<64x32xf32>
      %c0_72 = arith.constant 0 : index
      %c0_73 = arith.constant 0 : index
      %120 = vector.load %arg11[%c0_72, %c0_73] : memref<64x32xf32, #tpu.memory_space<vmem>>, vector<64x32xf32>
      tpu.vector_store %arg11[%c0_72, %c0_73], %119 {strides = array<i32>} : memref<64x32xf32, #tpu.memory_space<vmem>>, vector<64x32xf32>,
    } else {
    }
    %c0 = arith.constant 0 : index
    %c0_1 = arith.constant 0 : index
    %c0_2 = arith.constant 0 : index
    %c0_3 = arith.constant 0 : index
    %3 = vector.load %arg2[%c0, %c0_1, %c0_2, %c0_3] : memref<1x1x64x128xbf16, #tpu.memory_space<vmem>>, vector<1x1x64x128xbf16>
    %4 = vector.shape_cast %3 : vector<1x1x64x128xbf16> to vector<64x128xbf16>
    %5 = arith.extf %4 : vector<64x128xbf16> to vector<64x128xf32>
    %c0_4 = arith.constant 0 : index
    %c0_5 = arith.constant 0 : index
    %6 = vector.load %arg10[%c0_4, %c0_5] : memref<64x32xf32, #tpu.memory_space<vmem>>, vector<64x32xf32>
    %c8_i32 = arith.constant 8 : i32
    %7 = tpu.dynamic_rotate %6 by %c8_i32 dim 0 : vector<64x32xf32>, i32 -> vector<64x32xf32>
    %c0_6 = arith.constant 0 : index
    %c0_7 = arith.constant 0 : index
    %c0_8 = arith.constant 0 : index
    %8 = vector.load %arg3[%c0_6, %c0_7, %c0_8] : memref<9x64x1xf32, #tpu.memory_space<vmem>>, vector<1x64x1xf32>
    %9 = vector.shape_cast %8 : vector<1x64x1xf32> to vector<64x1xf32>
    %10 = vector.broadcast %9 : vector<64x1xf32> to vector<64x32xf32>
    %11 = arith.mulf %7, %10 : vector<64x32xf32>
    %12 = arith.truncf %11 : vector<64x32xf32> to vector<64x32xbf16>
    %c0_9 = arith.constant 0 : index
    %c0_10 = arith.constant 0 : index
    %c0_11 = arith.constant 0 : index
    %13 = vector.load %arg4[%c0_9, %c0_10, %c0_11] : memref<9x32x128xbf16, #tpu.memory_space<vmem>>, vector<1x32x128xbf16>
    %14 = vector.shape_cast %13 : vector<1x32x128xbf16> to vector<32x128xbf16>
    %cst = arith.constant dense<0.000000e+00> : vector<64x128xf32>
    %15 = tpu.matmul %12, %14, %cst {dimension_numbers = #tpu.dot_dimension_numbers<[1], [0], [0], [1], [0, 0, 1, 1], [], []>} : vector<64x32xbf16>, vector<32x128xbf16>, vector<64x128xf32> -> vector<64x128xf32>
    %16 = arith.addf %5, %15 : vector<64x128xf32>
    %c7_i32 = arith.constant 7 : i32
    %17 = tpu.dynamic_rotate %6 by %c7_i32 dim 0 : vector<64x32xf32>, i32 -> vector<64x32xf32>
    %c1 = arith.constant 1 : index
    %c0_12 = arith.constant 0 : index
    %c0_13 = arith.constant 0 : index
    %18 = vector.load %arg3[%c1, %c0_12, %c0_13] : memref<9x64x1xf32, #tpu.memory_space<vmem>>, vector<1x64x1xf32>
    %19 = vector.shape_cast %18 : vector<1x64x1xf32> to vector<64x1xf32>
    %20 = vector.broadcast %19 : vector<64x1xf32> to vector<64x32xf32>
    %21 = arith.mulf %17, %20 : vector<64x32xf32>
    %22 = arith.truncf %21 : vector<64x32xf32> to vector<64x32xbf16>
    %c1_14 = arith.constant 1 : index
    %c0_15 = arith.constant 0 : index
    %c0_16 = arith.constant 0 : index
    %23 = vector.load %arg4[%c1_14, %c0_15, %c0_16] : memref<9x32x128xbf16, #tpu.memory_space<vmem>>, vector<1x32x128xbf16>
    %24 = vector.shape_cast %23 : vector<1x32x128xbf16> to vector<32x128xbf16>
    %cst_17 = arith.constant dense<0.000000e+00> : vector<64x128xf32>
    %25 = tpu.matmul %22, %24, %cst_17 {dimension_numbers = #tpu.dot_dimension_numbers<[1], [0], [0], [1], [0, 0, 1, 1], [], []>} : vector<64x32xbf16>, vector<32x128xbf16>, vector<64x128xf32> -> vector<64x128xf32>
    %26 = arith.addf %16, %25 : vector<64x128xf32>
    %c6_i32 = arith.constant 6 : i32
    %27 = tpu.dynamic_rotate %6 by %c6_i32 dim 0 : vector<64x32xf32>, i32 -> vector<64x32xf32>
    %c2 = arith.constant 2 : index
    %c0_18 = arith.constant 0 : index
    %c0_19 = arith.constant 0 : index
    %28 = vector.load %arg3[%c2, %c0_18, %c0_19] : memref<9x64x1xf32, #tpu.memory_space<vmem>>, vector<1x64x1xf32>
    %29 = vector.shape_cast %28 : vector<1x64x1xf32> to vector<64x1xf32>
    %30 = vector.broadcast %29 : vector<64x1xf32> to vector<64x32xf32>
    %31 = arith.mulf %27, %30 : vector<64x32xf32>
    %32 = arith.truncf %31 : vector<64x32xf32> to vector<64x32xbf16>
    %c2_20 = arith.constant 2 : index
    %c0_21 = arith.constant 0 : index
    %c0_22 = arith.constant 0 : index
    %33 = vector.load %arg4[%c2_20, %c0_21, %c0_22] : memref<9x32x128xbf16, #tpu.memory_space<vmem>>, vector<1x32x128xbf16>
    %34 = vector.shape_cast %33 : vector<1x32x128xbf16> to vector<32x128xbf16>
    %cst_23 = arith.constant dense<0.000000e+00> : vector<64x128xf32>
    %35 = tpu.matmul %32, %34, %cst_23 {dimension_numbers = #tpu.dot_dimension_numbers<[1], [0], [0], [1], [0, 0, 1, 1], [], []>} : vector<64x32xbf16>, vector<32x128xbf16>, vector<64x128xf32> -> vector<64x128xf32>
    %36 = arith.addf %26, %35 : vector<64x128xf32>
    %c1_i32 = arith.constant 1 : i32
    %37 = tpu.dynamic_rotate %6 by %c1_i32 dim 0 : vector<64x32xf32>, i32 -> vector<64x32xf32>
    %c3 = arith.constant 3 : index
    %c0_24 = arith.constant 0 : index
    %c0_25 = arith.constant 0 : index
    %38 = vector.load %arg3[%c3, %c0_24, %c0_25] : memref<9x64x1xf32, #tpu.memory_space<vmem>>, vector<1x64x1xf32>
    %39 = vector.shape_cast %38 : vector<1x64x1xf32> to vector<64x1xf32>
    %40 = vector.broadcast %39 : vector<64x1xf32> to vector<64x32xf32>
    %41 = arith.mulf %37, %40 : vector<64x32xf32>
    %42 = arith.truncf %41 : vector<64x32xf32> to vector<64x32xbf16>
    %c3_26 = arith.constant 3 : index
    %c0_27 = arith.constant 0 : index
    %c0_28 = arith.constant 0 : index
    %43 = vector.load %arg4[%c3_26, %c0_27, %c0_28] : memref<9x32x128xbf16, #tpu.memory_space<vmem>>, vector<1x32x128xbf16>
    %44 = vector.shape_cast %43 : vector<1x32x128xbf16> to vector<32x128xbf16>
    %cst_29 = arith.constant dense<0.000000e+00> : vector<64x128xf32>
    %45 = tpu.matmul %42, %44, %cst_29 {dimension_numbers = #tpu.dot_dimension_numbers<[1], [0], [0], [1], [0, 0, 1, 1], [], []>} : vector<64x32xbf16>, vector<32x128xbf16>, vector<64x128xf32> -> vector<64x128xf32>
    %46 = arith.addf %36, %45 : vector<64x128xf32>
    %c4 = arith.constant 4 : index
    %c0_30 = arith.constant 0 : index
    %c0_31 = arith.constant 0 : index
    %47 = vector.load %arg3[%c4, %c0_30, %c0_31] : memref<9x64x1xf32, #tpu.memory_space<vmem>>, vector<1x64x1xf32>
    %48 = vector.shape_cast %47 : vector<1x64x1xf32> to vector<64x1xf32>
    %49 = vector.broadcast %48 : vector<64x1xf32> to vector<64x32xf32>
    %50 = arith.mulf %6, %49 : vector<64x32xf32>
    %51 = arith.truncf %50 : vector<64x32xf32> to vector<64x32xbf16>
    %c4_32 = arith.constant 4 : index
    %c0_33 = arith.constant 0 : index
    %c0_34 = arith.constant 0 : index
    %52 = vector.load %arg4[%c4_32, %c0_33, %c0_34] : memref<9x32x128xbf16, #tpu.memory_space<vmem>>, vector<1x32x128xbf16>
    %53 = vector.shape_cast %52 : vector<1x32x128xbf16> to vector<32x128xbf16>
    %cst_35 = arith.constant dense<0.000000e+00> : vector<64x128xf32>
    %54 = tpu.matmul %51, %53, %cst_35 {dimension_numbers = #tpu.dot_dimension_numbers<[1], [0], [0], [1], [0, 0, 1, 1], [], []>} : vector<64x32xbf16>, vector<32x128xbf16>, vector<64x128xf32> -> vector<64x128xf32>
    %55 = arith.addf %46, %54 : vector<64x128xf32>
    %c63_i32 = arith.constant 63 : i32
    %56 = tpu.dynamic_rotate %6 by %c63_i32 dim 0 : vector<64x32xf32>, i32 -> vector<64x32xf32>
    %c5 = arith.constant 5 : index
    %c0_36 = arith.constant 0 : index
    %c0_37 = arith.constant 0 : index
    %57 = vector.load %arg3[%c5, %c0_36, %c0_37] : memref<9x64x1xf32, #tpu.memory_space<vmem>>, vector<1x64x1xf32>
    %58 = vector.shape_cast %57 : vector<1x64x1xf32> to vector<64x1xf32>
    %59 = vector.broadcast %58 : vector<64x1xf32> to vector<64x32xf32>
    %60 = arith.mulf %56, %59 : vector<64x32xf32>
    %61 = arith.truncf %60 : vector<64x32xf32> to vector<64x32xbf16>
    %c5_38 = arith.constant 5 : index
    %c0_39 = arith.constant 0 : index
    %c0_40 = arith.constant 0 : index
    %62 = vector.load %arg4[%c5_38, %c0_39, %c0_40] : memref<9x32x128xbf16, #tpu.memory_space<vmem>>, vector<1x32x128xbf16>
    %63 = vector.shape_cast %62 : vector<1x32x128xbf16> to vector<32x128xbf16>
    %cst_41 = arith.constant dense<0.000000e+00> : vector<64x128xf32>
    %64 = tpu.matmul %61, %63, %cst_41 {dimension_numbers = #tpu.dot_dimension_numbers<[1], [0], [0], [1], [0, 0, 1, 1], [], []>} : vector<64x32xbf16>, vector<32x128xbf16>, vector<64x128xf32> -> vector<64x128xf32>
    %65 = arith.addf %55, %64 : vector<64x128xf32>
    %c58_i32 = arith.constant 58 : i32
    %66 = tpu.dynamic_rotate %6 by %c58_i32 dim 0 : vector<64x32xf32>, i32 -> vector<64x32xf32>
    %c6 = arith.constant 6 : index
    %c0_42 = arith.constant 0 : index
    %c0_43 = arith.constant 0 : index
    %67 = vector.load %arg3[%c6, %c0_42, %c0_43] : memref<9x64x1xf32, #tpu.memory_space<vmem>>, vector<1x64x1xf32>
    %68 = vector.shape_cast %67 : vector<1x64x1xf32> to vector<64x1xf32>
    %69 = vector.broadcast %68 : vector<64x1xf32> to vector<64x32xf32>
    %70 = arith.mulf %66, %69 : vector<64x32xf32>
    %71 = arith.truncf %70 : vector<64x32xf32> to vector<64x32xbf16>
    %c6_44 = arith.constant 6 : index
    %c0_45 = arith.constant 0 : index
    %c0_46 = arith.constant 0 : index
    %72 = vector.load %arg4[%c6_44, %c0_45, %c0_46] : memref<9x32x128xbf16, #tpu.memory_space<vmem>>, vector<1x32x128xbf16>
    %73 = vector.shape_cast %72 : vector<1x32x128xbf16> to vector<32x128xbf16>
    %cst_47 = arith.constant dense<0.000000e+00> : vector<64x128xf32>
    %74 = tpu.matmul %71, %73, %cst_47 {dimension_numbers = #tpu.dot_dimension_numbers<[1], [0], [0], [1], [0, 0, 1, 1], [], []>} : vector<64x32xbf16>, vector<32x128xbf16>, vector<64x128xf32> -> vector<64x128xf32>
    %75 = arith.addf %65, %74 : vector<64x128xf32>
    %c57_i32 = arith.constant 57 : i32
    %76 = tpu.dynamic_rotate %6 by %c57_i32 dim 0 : vector<64x32xf32>, i32 -> vector<64x32xf32>
    %c7 = arith.constant 7 : index
    %c0_48 = arith.constant 0 : index
    %c0_49 = arith.constant 0 : index
    %77 = vector.load %arg3[%c7, %c0_48, %c0_49] : memref<9x64x1xf32, #tpu.memory_space<vmem>>, vector<1x64x1xf32>
    %78 = vector.shape_cast %77 : vector<1x64x1xf32> to vector<64x1xf32>
    %79 = vector.broadcast %78 : vector<64x1xf32> to vector<64x32xf32>
    %80 = arith.mulf %76, %79 : vector<64x32xf32>
    %81 = arith.truncf %80 : vector<64x32xf32> to vector<64x32xbf16>
    %c7_50 = arith.constant 7 : index
    %c0_51 = arith.constant 0 : index
    %c0_52 = arith.constant 0 : index
    %82 = vector.load %arg4[%c7_50, %c0_51, %c0_52] : memref<9x32x128xbf16, #tpu.memory_space<vmem>>, vector<1x32x128xbf16>
    %83 = vector.shape_cast %82 : vector<1x32x128xbf16> to vector<32x128xbf16>
    %cst_53 = arith.constant dense<0.000000e+00> : vector<64x128xf32>
    %84 = tpu.matmul %81, %83, %cst_53 {dimension_numbers = #tpu.dot_dimension_numbers<[1], [0], [0], [1], [0, 0, 1, 1], [], []>} : vector<64x32xbf16>, vector<32x128xbf16>, vector<64x128xf32> -> vector<64x128xf32>
    %85 = arith.addf %75, %84 : vector<64x128xf32>
    %c56_i32 = arith.constant 56 : i32
    %86 = tpu.dynamic_rotate %6 by %c56_i32 dim 0 : vector<64x32xf32>, i32 -> vector<64x32xf32>
    %c8 = arith.constant 8 : index
    %c0_54 = arith.constant 0 : index
    %c0_55 = arith.constant 0 : index
    %87 = vector.load %arg3[%c8, %c0_54, %c0_55] : memref<9x64x1xf32, #tpu.memory_space<vmem>>, vector<1x64x1xf32>
    %88 = vector.shape_cast %87 : vector<1x64x1xf32> to vector<64x1xf32>
    %89 = vector.broadcast %88 : vector<64x1xf32> to vector<64x32xf32>
    %90 = arith.mulf %86, %89 : vector<64x32xf32>
    %91 = arith.truncf %90 : vector<64x32xf32> to vector<64x32xbf16>
    %c8_56 = arith.constant 8 : index
    %c0_57 = arith.constant 0 : index
    %c0_58 = arith.constant 0 : index
    %92 = vector.load %arg4[%c8_56, %c0_57, %c0_58] : memref<9x32x128xbf16, #tpu.memory_space<vmem>>, vector<1x32x128xbf16>
    %93 = vector.shape_cast %92 : vector<1x32x128xbf16> to vector<32x128xbf16>
    %cst_59 = arith.constant dense<0.000000e+00> : vector<64x128xf32>
    %94 = tpu.matmul %91, %93, %cst_59 {dimension_numbers = #tpu.dot_dimension_numbers<[1], [0], [0], [1], [0, 0, 1, 1], [], []>} : vector<64x32xbf16>, vector<32x128xbf16>, vector<64x128xf32> -> vector<64x128xf32>
    %95 = arith.addf %85, %94 : vector<64x128xf32>
    %96 = arith.negf %95 : vector<64x128xf32>
    %97 = math.exp %96 : vector<64x128xf32>
    %cst_60 = arith.constant 1.000000e+00 : f32
    %98 = vector.broadcast %cst_60 : f32 to vector<64x128xf32>
    %99 = arith.addf %98, %97 : vector<64x128xf32>
    %100 = arith.divf %98, %99 : vector<64x128xf32>
    %101 = math.tanh %95 : vector<64x128xf32>
    %102 = vector.extract_strided_slice %100 {offsets = [0, 0], sizes = [64, 32], strides = [1, 1]} : vector<64x128xf32> to vector<64x32xf32>
    %103 = vector.extract_strided_slice %100 {offsets = [0, 32], sizes = [64, 32], strides = [1, 1]} : vector<64x128xf32> to vector<64x32xf32>
    %104 = vector.extract_strided_slice %101 {offsets = [0, 64], sizes = [64, 32], strides = [1, 1]} : vector<64x128xf32> to vector<64x32xf32>
    %105 = vector.extract_strided_slice %100 {offsets = [0, 96], sizes = [64, 32], strides = [1, 1]} : vector<64x128xf32> to vector<64x32xf32>
    %106 = arith.mulf %104, %102 : vector<64x32xf32>
    %c0_61 = arith.constant 0 : index
    %c0_62 = arith.constant 0 : index
    %107 = vector.load %arg11[%c0_61, %c0_62] : memref<64x32xf32, #tpu.memory_space<vmem>>, vector<64x32xf32>
    %108 = arith.mulf %107, %103 : vector<64x32xf32>
    %109 = arith.addf %106, %108 : vector<64x32xf32>
    %110 = math.tanh %109 : vector<64x32xf32>
    %111 = arith.mulf %105, %110 : vector<64x32xf32>
    %c0_63 = arith.constant 0 : index
    %c0_64 = arith.constant 0 : index
    %112 = vector.load %arg11[%c0_63, %c0_64] : memref<64x32xf32, #tpu.memory_space<vmem>>, vector<64x32xf32>
    tpu.vector_store %arg11[%c0_63, %c0_64], %109 {strides = array<i32>} : memref<64x32xf32, #tpu.memory_space<vmem>>, vector<64x32xf32>,
    %c0_65 = arith.constant 0 : index
    %c0_66 = arith.constant 0 : index
    %113 = vector.load %arg10[%c0_65, %c0_66] : memref<64x32xf32, #tpu.memory_space<vmem>>, vector<64x32xf32>
    tpu.vector_store %arg10[%c0_65, %c0_66], %111 {strides = array<i32>} : memref<64x32xf32, #tpu.memory_space<vmem>>, vector<64x32xf32>,
    %c3_i32 = arith.constant 3 : i32
    %114 = arith.cmpi eq, %arg1, %c3_i32 : i32
    %115 = arith.extui %114 : i1 to i32
    %c0_i32_67 = arith.constant 0 : i32
    %116 = arith.cmpi ne, %115, %c0_i32_67 : i32
    scf.if %116 {
      %c0_68 = arith.constant 0 : index
      %c0_69 = arith.constant 0 : index
      %117 = vector.load %arg7[%c0_68, %c0_69] : memref<1x64xf32, #tpu.memory_space<vmem>>, vector<1x64xf32>
      %cst_70 = arith.constant dense<0.000000e+00> : vector<1x32xf32>
      %118 = tpu.matmul %117, %109, %cst_70 {dimension_numbers = #tpu.dot_dimension_numbers<[1], [0], [0], [1], [0, 0, 1, 1], [], []>} : vector<1x64xf32>, vector<64x32xf32>, vector<1x32xf32> -> vector<1x32xf32>
      %c0_71 = arith.constant 0 : index
      %c0_72 = arith.constant 0 : index
      %c0_73 = arith.constant 0 : index
      %119 = vector.load %arg9[%c0_71, %c0_72, %c0_73] : memref<1x1x32xf32, #tpu.memory_space<vmem>>, vector<1x1x32xf32>
      %120 = vector.shape_cast %119 : vector<1x1x32xf32> to vector<1x32xf32>
      %121 = vector.shape_cast %118 : vector<1x32xf32> to vector<1x1x32xf32>
      tpu.vector_store %arg9[%c0_71, %c0_72, %c0_73], %121 {strides = array<i32>} : memref<1x1x32xf32, #tpu.memory_space<vmem>>, vector<1x1x32xf32>,
      %c0_74 = arith.constant 0 : index
      %c0_75 = arith.constant 0 : index
      %122 = vector.load %arg5[%c0_74, %c0_75] : memref<32x128xf32, #tpu.memory_space<vmem>>, vector<32x128xf32>
      %cst_76 = arith.constant dense<0.000000e+00> : vector<1x128xf32>
      %123 = tpu.matmul %118, %122, %cst_76 {dimension_numbers = #tpu.dot_dimension_numbers<[1], [0], [0], [1], [0, 0, 1, 1], [], []>} : vector<1x32xf32>, vector<32x128xf32>, vector<1x128xf32> -> vector<1x128xf32>
      %c0_77 = arith.constant 0 : index
      %c0_78 = arith.constant 0 : index
      %124 = vector.load %arg6[%c0_77, %c0_78] : memref<1x128xf32, #tpu.memory_space<vmem>>, vector<1x128xf32>
      %125 = arith.addf %123, %124 : vector<1x128xf32>
      %c0_79 = arith.constant 0 : index
      %c0_80 = arith.constant 0 : index
      %c0_81 = arith.constant 0 : index
      %126 = vector.load %arg8[%c0_79, %c0_80, %c0_81] : memref<1x1x128xf32, #tpu.memory_space<vmem>>, vector<1x1x128xf32>
      %127 = vector.shape_cast %126 : vector<1x1x128xf32> to vector<1x128xf32>
      %128 = vector.shape_cast %125 : vector<1x128xf32> to vector<1x1x128xf32>
      tpu.vector_store %arg8[%c0_79, %c0_80, %c0_81], %128 {strides = array<i32>} : memref<1x1x128xf32, #tpu.memory_space<vmem>>, vector<1x1x128xf32>,
    } else {
    }
    return
  }
  func.func @transform_0(%arg0: i32, %arg1: i32) -> (i32, i32, i32, i32) {
    %c0_i32 = arith.constant 0 : i32
    %c0_i32_0 = arith.constant 0 : i32
    %c0_i32_1 = arith.constant 0 : i32
    return %arg0, %arg1, %c0_i32, %c0_i32_0 : i32, i32, i32, i32
  }
  func.func @transform_1(%arg0: i32, %arg1: i32) -> (i32, i32, i32) {
    %c0_i32 = arith.constant 0 : i32
    %c0_i32_0 = arith.constant 0 : i32
    %c0_i32_1 = arith.constant 0 : i32
    %c0_i32_2 = arith.constant 0 : i32
    return %c0_i32, %c0_i32_0, %c0_i32_1 : i32, i32, i32
  }
  func.func @transform_2(%arg0: i32, %arg1: i32) -> (i32, i32, i32) {
    %c0_i32 = arith.constant 0 : i32
    %c0_i32_0 = arith.constant 0 : i32
    %c0_i32_1 = arith.constant 0 : i32
    %c0_i32_2 = arith.constant 0 : i32
    return %c0_i32, %c0_i32_0, %c0_i32_1 : i32, i32, i32
  }
  func.func @transform_3(%arg0: i32, %arg1: i32) -> (i32, i32) {
    %c0_i32 = arith.constant 0 : i32
    %c0_i32_0 = arith.constant 0 : i32
    %c0_i32_1 = arith.constant 0 : i32
    return %c0_i32, %c0_i32_0 : i32, i32
  }
  func.func @transform_4(%arg0: i32, %arg1: i32) -> (i32, i32) {
    %c0_i32 = arith.constant 0 : i32
    %c0_i32_0 = arith.constant 0 : i32
    %c0_i32_1 = arith.constant 0 : i32
    return %c0_i32, %c0_i32_0 : i32, i32
  }
  func.func @transform_5(%arg0: i32, %arg1: i32) -> (i32, i32) {
    %c0_i32 = arith.constant 0 : i32
    %c0_i32_0 = arith.constant 0 : i32
    %c0_i32_1 = arith.constant 0 : i32
    return %c0_i32, %c0_i32_0 : i32, i32
  }
  func.func @transform_6(%arg0: i32, %arg1: i32) -> (i32, i32, i32) {
    %c0_i32 = arith.constant 0 : i32
    %c0_i32_0 = arith.constant 0 : i32
    %c0_i32_1 = arith.constant 0 : i32
    return %arg0, %c0_i32, %c0_i32_0 : i32, i32, i32
  }
  func.func @transform_7(%arg0: i32, %arg1: i32) -> (i32, i32, i32) {
    %c0_i32 = arith.constant 0 : i32
    %c0_i32_0 = arith.constant 0 : i32
    %c0_i32_1 = arith.constant 0 : i32
    return %arg0, %c0_i32, %c0_i32_0 : i32, i32, i32
  }
}

</mosaic_0001>

<llo_original>
// kernel: tpu_custom_call.1
$region0: #{tpu_custom_call.1}
  #allocation0 [shape = 'u32[]', space=smem, size = 0x4, offset = 0x4, fixed_abs, tag = 'smem constant byte address 0x4 - core index']
  #allocation1 [shape = 'u32[144,128]{1,0:T(1,128)}', space=vmem, size = 0x12000, scoped, tag = 'internal scratch']
  #allocation2 [shape = 'f32[64,32]{1,0:T(8,128)}', space=vmem, size = 0x8000, scoped, tag = 'scratch operand']
  #allocation3 [shape = 'f32[64,32]{1,0:T(8,128)}', space=vmem, size = 0x8000, scoped, tag = 'scratch operand']
  %s0 = inlined_call_operand.vmem [shape: bf16[2,4,64,128], index: 0, kind: input, shape index: {}]
  %s1 = inlined_call_operand.vmem [shape: f32[9,64,1], index: 1, kind: input, shape index: {}]
  %s2 = inlined_call_operand.vmem [shape: bf16[9,32,128], index: 2, kind: input, shape index: {}]
  %s3 = inlined_call_operand.vmem [shape: f32[32,128], index: 3, kind: input, shape index: {}]
  %s4 = inlined_call_operand.vmem [shape: f32[1,128], index: 4, kind: input, shape index: {}]
  %s5 = inlined_call_operand.vmem [shape: f32[1,64], index: 5, kind: input, shape index: {}]
  %s6 = inlined_call_operand.hbm [shape: f32[2,1,128], index: 6, kind: output, shape index: {0}]
  %s7 = inlined_call_operand.hbm [shape: f32[2,1,32], index: 7, kind: output, shape index: {1}]
  %8 = xla_tuple %s6, %s7
  %s9 = sld [smem:[#allocation0]]
  $region73: #{tpu_custom_call.1} parent=0
    _
  %s11 = ssub.s32 1, %s9
  %s12 = scalar_select 0, %s11, %s9
  $region1: #{tpu_custom_call.1} parent=0
    #allocation4 [shape = 'u8[1024]{0}', space=vmem, size = 0x400, scoped, tag = 'output window, operand 0']
    #allocation5 [shape = 's32[2]{0}', space=sflag, size = 0x8, scoped, tag = 'scoped memory for tpu_custom_call.1']
    #allocation6 [shape = 'u8[1024]{0}', space=vmem, size = 0x400, scoped, tag = 'output window, operand 1']
    #allocation7 [shape = 's32[2]{0}', space=sflag, size = 0x8, scoped, tag = 'scoped memory for tpu_custom_call.1']
    %13 = vsyncpa [#allocation5], 0
    %s14 = scalar_lea.sflag [#allocation5], 1
    %15 = vsyncpa %s14, 0
    %16 = vsyncpa [#allocation7], 0
    %s17 = scalar_lea.sflag [#allocation7], 1
    %18 = vsyncpa %s17, 0
    loop: start=0, step=1, limit=10
    $region2: #{tpu_custom_call.1} parent=1 // loop_pre_header
      _
    $region3: #{tpu_custom_call.1} parent=1 // loop_header
      %s20 = sphi 0, %s24
      %p21 = scmp.ge.s32.totalorder %s20, 10
      %s27 = sphi 0, %s39
      %s28 = sphi 0, %s35
      %s29 = sphi 0, %s27
      %s30 = sphi 0, %s28
      %s31 = sphi 0, %s29
      %s32 = sphi 0, %s30
      %s44 = sphi 0, %s46
      %s47 = sphi 0, %s44
      %s48 = sphi 0, %s47
      %s64 = sphi 0, %s48
      %s68 = sphi 0, %s68
      %s70 = sphi 0, %s68
      %s71 = sphi 0, %s70
      %s85 = sphi 0, %s71
      %s89 = sphi 0, %s89
      %s91 = sphi 0, %s89
      %s92 = sphi 0, %s91
      %s106 = sphi 0, %s92
      %s110 = sphi 0, %s110
      %s112 = sphi 0, %s110
      %s113 = sphi 0, %s112
      %s127 = sphi 0, %s113
      %s131 = sphi 0, %s131
      %s133 = sphi 0, %s131
      %s134 = sphi 0, %s133
      %s148 = sphi 0, %s134
      %s152 = sphi 0, %s152
      %s154 = sphi 0, %s152
      %s155 = sphi 0, %s154
      %s169 = sphi 0, %s155
      %s175 = sphi 0, %s177
      %s178 = sphi 0, %s175
      %s179 = sphi 0, %s178
      %s195 = sphi 0, %s179
      %s201 = sphi 0, %s203
      %s204 = sphi 0, %s201
      %s205 = sphi 0, %s204
      %s221 = sphi 0, %s205
    $region4: #{tpu_custom_call.1} parent=1 // loop_header_branch
      %23 = sbr.rel (%p21) target = $region8
    $region5: #{tpu_custom_call.1} parent=1 // loop_body
      %s25 = ssub.s32 %s20, 1
      %s26 = ssub.s32 %s20, 2
      %s33 = sadd.s32 1, %s28
      %p34 = scmp.ge.s32.totalorder %s33, 4
      %s35 = scalar_select %p34, 0, %s33
      %s36 = sadd.s32 1, %s27
      %s37 = scalar_select %p34, %s36, %s27
      %p38 = scmp.ge.s32.totalorder %s37, 2
      %s39 = scalar_select %p38, 0, %s37
      %s40 = ssub.s32 %s27, %s39
      %s41 = ssub.s32 %s28, %s35
      %s42 = sor.u32 %s40, %s41
      %p43 = scmp.eq.s32.totalorder %s42, 0
      %s45 = sadd.s32 %s44, 1
      %s46 = scalar_select %p43, %s44, %s45
      %p49 = pneg %p43
      %p50 = scmp.eq.s32.totalorder %s20, 7
      %p51 = por %p49, %p50
      %p52 = scmp.ne.s32.totalorder %s44, %s47
      %p53 = scmp.eq.s32.totalorder %s20, 0
      %p54 = por %p52, %p53
      %p55 = scmp.ne.s32.totalorder %s44, %s47
      %p56 = scmp.eq.s32.totalorder %s25, 7
      %p57 = por %p55, %p56
      %p58 = scmp.ne.s32.totalorder %s47, %s48
      %p59 = scmp.eq.s32.totalorder %s25, 0
      %p60 = por %p58, %p59
      %p61 = scmp.ne.s32.totalorder %s47, %s48
      %p62 = scmp.eq.s32.totalorder %s26, 7
      %p63 = por %p61, %p62
      %p65 = scmp.ne.s32.totalorder %s48, %s64
      %p66 = scmp.eq.s32.totalorder %s26, 0
      %p67 = por %p65, %p66
      %s69 = sadd.s32 %s68, 1
      %p72 = scmp.eq.s32.totalorder %s20, 7
      %p73 = scmp.ne.s32.totalorder %s68, %s70
      %p74 = scmp.eq.s32.totalorder %s20, 0
      %p75 = por %p73, %p74
      %p76 = scmp.ne.s32.totalorder %s68, %s70
      %p77 = scmp.eq.s32.totalorder %s25, 7
      %p78 = por %p76, %p77
      %p79 = scmp.ne.s32.totalorder %s70, %s71
      %p80 = scmp.eq.s32.totalorder %s25, 0
      %p81 = por %p79, %p80
      %p82 = scmp.ne.s32.totalorder %s70, %s71
      %p83 = scmp.eq.s32.totalorder %s26, 7
      %p84 = por %p82, %p83
      %p86 = scmp.ne.s32.totalorder %s71, %s85
      %p87 = scmp.eq.s32.totalorder %s26, 0
      %p88 = por %p86, %p87
      %s90 = sadd.s32 %s89, 1
      %p93 = scmp.eq.s32.totalorder %s20, 7
      %p94 = scmp.ne.s32.totalorder %s89, %s91
      %p95 = scmp.eq.s32.totalorder %s20, 0
      %p96 = por %p94, %p95
      %p97 = scmp.ne.s32.totalorder %s89, %s91
      %p98 = scmp.eq.s32.totalorder %s25, 7
      %p99 = por %p97, %p98
      %p100 = scmp.ne.s32.totalorder %s91, %s92
      %p101 = scmp.eq.s32.totalorder %s25, 0
      %p102 = por %p100, %p101
      %p103 = scmp.ne.s32.totalorder %s91, %s92
      %p104 = scmp.eq.s32.totalorder %s26, 7
      %p105 = por %p103, %p104
      %p107 = scmp.ne.s32.totalorder %s92, %s106
      %p108 = scmp.eq.s32.totalorder %s26, 0
      %p109 = por %p107, %p108
      %s111 = sadd.s32 %s110, 1
      %p114 = scmp.eq.s32.totalorder %s20, 7
      %p115 = scmp.ne.s32.totalorder %s110, %s112
      %p116 = scmp.eq.s32.totalorder %s20, 0
      %p117 = por %p115, %p116
      %p118 = scmp.ne.s32.totalorder %s110, %s112
      %p119 = scmp.eq.s32.totalorder %s25, 7
      %p120 = por %p118, %p119
      %p121 = scmp.ne.s32.totalorder %s112, %s113
      %p122 = scmp.eq.s32.totalorder %s25, 0
      %p123 = por %p121, %p122
      %p124 = scmp.ne.s32.totalorder %s112, %s113
      %p125 = scmp.eq.s32.totalorder %s26, 7
      %p126 = por %p124, %p125
      %p128 = scmp.ne.s32.totalorder %s113, %s127
      %p129 = scmp.eq.s32.totalorder %s26, 0
      %p130 = por %p128, %p129
      %s132 = sadd.s32 %s131, 1
      %p135 = scmp.eq.s32.totalorder %s20, 7
      %p136 = scmp.ne.s32.totalorder %s131, %s133
      %p137 = scmp.eq.s32.totalorder %s20, 0
      %p138 = por %p136, %p137
      %p139 = scmp.ne.s32.totalorder %s131, %s133
      %p140 = scmp.eq.s32.totalorder %s25, 7
      %p141 = por %p139, %p140
      %p142 = scmp.ne.s32.totalorder %s133, %s134
      %p143 = scmp.eq.s32.totalorder %s25, 0
      %p144 = por %p142, %p143
      %p145 = scmp.ne.s32.totalorder %s133, %s134
      %p146 = scmp.eq.s32.totalorder %s26, 7
      %p147 = por %p145, %p146
      %p149 = scmp.ne.s32.totalorder %s134, %s148
      %p150 = scmp.eq.s32.totalorder %s26, 0
      %p151 = por %p149, %p150
      %s153 = sadd.s32 %s152, 1
      %p156 = scmp.eq.s32.totalorder %s20, 7
      %p157 = scmp.ne.s32.totalorder %s152, %s154
      %p158 = scmp.eq.s32.totalorder %s20, 0
      %p159 = por %p157, %p158
      %p160 = scmp.ne.s32.totalorder %s152, %s154
      %p161 = scmp.eq.s32.totalorder %s25, 7
      %p162 = por %p160, %p161
      %p163 = scmp.ne.s32.totalorder %s154, %s155
      %p164 = scmp.eq.s32.totalorder %s25, 0
      %p165 = por %p163, %p164
      %p166 = scmp.ne.s32.totalorder %s154, %s155
      %p167 = scmp.eq.s32.totalorder %s26, 7
      %p168 = por %p166, %p167
      %p170 = scmp.ne.s32.totalorder %s155, %s169
      %p171 = scmp.eq.s32.totalorder %s26, 0
      %p172 = por %p170, %p171
      %s173 = ssub.s32 %s27, %s39
      %p174 = scmp.eq.s32.totalorder %s173, 0
      %s176 = sadd.s32 %s175, 1
      %s177 = scalar_select %p174, %s175, %s176
      %p180 = pneg %p174
      %p181 = scmp.eq.s32.totalorder %s20, 7
      %p182 = por %p180, %p181
      %p183 = scmp.ne.s32.totalorder %s175, %s178
      %p184 = scmp.eq.s32.totalorder %s20, 0
      %p185 = por %p183, %p184
      %p186 = scmp.ne.s32.totalorder %s175, %s178
      %p187 = scmp.eq.s32.totalorder %s25, 7
      %p188 = por %p186, %p187
      %p189 = scmp.ne.s32.totalorder %s178, %s179
      %p190 = scmp.eq.s32.totalorder %s25, 0
      %p191 = por %p189, %p190
      %p192 = scmp.ne.s32.totalorder %s178, %s179
      %p193 = scmp.eq.s32.totalorder %s26, 7
      %p194 = por %p192, %p193
      %p196 = scmp.ne.s32.totalorder %s179, %s195
      %p197 = scmp.eq.s32.totalorder %s26, 0
      %p198 = por %p196, %p197
      %s199 = ssub.s32 %s27, %s39
      %p200 = scmp.eq.s32.totalorder %s199, 0
      %s202 = sadd.s32 %s201, 1
      %s203 = scalar_select %p200, %s201, %s202
      %p206 = pneg %p200
      %p207 = scmp.eq.s32.totalorder %s20, 7
      %p208 = por %p206, %p207
      %p209 = scmp.ne.s32.totalorder %s201, %s204
      %p210 = scmp.eq.s32.totalorder %s20, 0
      %p211 = por %p209, %p210
      %p212 = scmp.ne.s32.totalorder %s201, %s204
      %p213 = scmp.eq.s32.totalorder %s25, 7
      %p214 = por %p212, %p213
      %p215 = scmp.ne.s32.totalorder %s204, %s205
      %p216 = scmp.eq.s32.totalorder %s25, 0
      %p217 = por %p215, %p216
      %p218 = scmp.ne.s32.totalorder %s204, %s205
      %p219 = scmp.eq.s32.totalorder %s26, 7
      %p220 = por %p218, %p219
      %p222 = scmp.ne.s32.totalorder %s205, %s221
      %p223 = scmp.eq.s32.totalorder %s26, 0
      %p224 = por %p222, %p223
      %p225 = scmp.le.s32.totalorder 1, %s20
      %p226 = scmp.lt.s32.totalorder %s20, 9
      %p227 = pnand %p225, %p226
      %p228 = pneg %p227
      // Predicated region
      $region9: #{tpu_custom_call.1} parent=5 // pred_check
        _
      $region10: #{tpu_custom_call.1} parent=5 // pred_check_branch
        %230 = sbr.rel (%p227) target = $region12
      $region11: #{tpu_custom_call.1} parent=5 // pred_region
        %s231 = ssub.s32 %s20, 1
        // Predicated region
        $region13: #{tpu_custom_call.1} parent=11 // pred_check
          %p232 = pneg %p81
        $region14: #{tpu_custom_call.1} parent=11 // pred_check_branch
          %234 = sbr.rel (%p232) target = $region16
        $region15: #{tpu_custom_call.1} parent=11 // pred_region
          _
        $region16: #{tpu_custom_call.1} parent=11 // pred_fallthru
          _
        // Predicated region
        $region17: #{tpu_custom_call.1} parent=11 // pred_check
          %p235 = pneg %p102
        $region18: #{tpu_custom_call.1} parent=11 // pred_check_branch
          %237 = sbr.rel (%p235) target = $region20
        $region19: #{tpu_custom_call.1} parent=11 // pred_region
          _
        $region20: #{tpu_custom_call.1} parent=11 // pred_fallthru
          _
        // Predicated region
        $region21: #{tpu_custom_call.1} parent=11 // pred_check
          %p238 = pneg %p123
        $region22: #{tpu_custom_call.1} parent=11 // pred_check_branch
          %240 = sbr.rel (%p238) target = $region24
        $region23: #{tpu_custom_call.1} parent=11 // pred_region
          _
        $region24: #{tpu_custom_call.1} parent=11 // pred_fallthru
          _
        // Predicated region
        $region25: #{tpu_custom_call.1} parent=11 // pred_check
          %p241 = pneg %p144
        $region26: #{tpu_custom_call.1} parent=11 // pred_check_branch
          %243 = sbr.rel (%p241) target = $region28
        $region27: #{tpu_custom_call.1} parent=11 // pred_region
          _
        $region28: #{tpu_custom_call.1} parent=11 // pred_fallthru
          _
        // Predicated region
        $region29: #{tpu_custom_call.1} parent=11 // pred_check
          %p244 = pneg %p165
        $region30: #{tpu_custom_call.1} parent=11 // pred_check_branch
          %246 = sbr.rel (%p244) target = $region32
        $region31: #{tpu_custom_call.1} parent=11 // pred_region
          _
        $region32: #{tpu_custom_call.1} parent=11 // pred_fallthru
          _
      $region12: #{tpu_custom_call.1} parent=5 // pred_fallthru
        _
      %p247 = scmp.lt.s32.totalorder %s20, 8
      // Predicated region
      $region33: #{tpu_custom_call.1} parent=5 // pred_check
        %p248 = pneg %p247
      $region34: #{tpu_custom_call.1} parent=5 // pred_check_branch
        %250 = sbr.rel (%p248) target = $region36
      $region35: #{tpu_custom_call.1} parent=5 // pred_region
        // Predicated region
        $region37: #{tpu_custom_call.1} parent=35 // pred_check
          %p251 = pneg %p54
        $region38: #{tpu_custom_call.1} parent=35 // pred_check_branch
          %253 = sbr.rel (%p251) target = $region40
        $region39: #{tpu_custom_call.1} parent=35 // pred_region
          %p254 = scmp.lt.s32.totalorder %s27, 1
          %s255 = scalar_select %p254, %s27, 1
          %p256 = scmp.lt.s32.totalorder %s28, 3
          %s257 = scalar_select %p256, %s28, 3
          %s258 = smul.addr %s257, 8
          %s259 = smul.addr %s255, 32
          %s260 = sadd.s32 %s258, %s259
          %s261 = smul.addr %s260, 4
          %s262 = scalar_lea.vmem %s0, %s261
        $region40: #{tpu_custom_call.1} parent=35 // pred_fallthru
          _
      $region36: #{tpu_custom_call.1} parent=5 // pred_fallthru
        _
      %p263 = scmp.le.s32.totalorder 1, %s20
      %p264 = scmp.lt.s32.totalorder %s20, 9
      %p265 = pnand %p263, %p264
      %p266 = pneg %p265
      // Predicated region
      $region41: #{tpu_custom_call.1} parent=5 // pred_check
        _
      $region42: #{tpu_custom_call.1} parent=5 // pred_check_branch
        %268 = sbr.rel (%p265) target = $region44
      $region43: #{tpu_custom_call.1} parent=5 // pred_region
        %s269 = ssub.s32 %s20, 1
        %p270 = scmp.lt.s32.totalorder %s29, 1
        %s271 = scalar_select %p270, %s29, 1
        %p272 = scmp.lt.s32.totalorder %s30, 3
        %s273 = scalar_select %p272, %s30, 3
        %s274 = smul.addr %s273, 8
        %s275 = smul.addr %s271, 32
        %s276 = sadd.s32 %s274, %s275
        %s277 = smul.addr %s276, 4
        %s278 = scalar_lea.vmem %s0, %s277
        %p279 = pneg %p60
        %p280 = pneg %p57
        %p281 = pneg %p81
        %p282 = pneg %p78
        %p283 = pneg %p102
        %p284 = pneg %p99
        %p285 = pneg %p123
        %p286 = pneg %p120
        %p287 = pneg %p144
        %p288 = pneg %p141
        %p289 = pneg %p165
        %p290 = pneg %p162
        %p291 = pneg %p191
        %p292 = pneg %p188
        %s293 = sand.u32 %s178, 1
        %s294 = scalar_lea.sflag [#allocation5], %s293
        %s295 = sand.u32 %s178, 1
        %s296 = scalar_lea.vmem [#allocation4], %s295
        %p297 = pneg %p217
        %p298 = pneg %p214
        %s299 = sand.u32 %s204, 1
        %s300 = scalar_lea.sflag [#allocation7], %s299
        %s301 = sand.u32 %s204, 1
        %s302 = scalar_lea.vmem [#allocation6], %s301
        %p303 = scmp.lt.s32.totalorder %s29, 1
        %s304 = scalar_select %p303, %s29, 1
        %p305 = scmp.lt.s32.totalorder %s30, 3
        %s306 = scalar_select %p305, %s30, 3
        %s307 = smul.addr %s306, 8
        %s308 = smul.addr %s304, 32
        %s309 = sadd.s32 %s307, %s308
        %s310 = smul.addr %s309, 4
        %s311 = scalar_lea.vmem %s0, %s310
        %p313 = scmp.eq.s32.totalorder %s30, 0
        // Predicated region
        $region45: #{tpu_custom_call.1} parent=43 // pred_check
          %p314 = pneg %p313
        $region46: #{tpu_custom_call.1} parent=43 // pred_check_branch
          %316 = sbr.rel (%p314) target = $region48
        $region47: #{tpu_custom_call.1} parent=43 // pred_region
          %vm317 = vcmask 261120
          %318 = vst.msk [vmem:[#allocation2] sm:$0xff] %vm317, 0.0
          %319 = vst.msk [vmem:[#allocation2 + $0x8] sm:$0xff] %vm317, 0.0
          %320 = vst.msk [vmem:[#allocation2 + $0x10] sm:$0xff] %vm317, 0.0
          %321 = vst.msk [vmem:[#allocation2 + $0x18] sm:$0xff] %vm317, 0.0
          %322 = vst.msk [vmem:[#allocation2 + $0x20] sm:$0xff] %vm317, 0.0
          %323 = vst.msk [vmem:[#allocation2 + $0x28] sm:$0xff] %vm317, 0.0
          %324 = vst.msk [vmem:[#allocation2 + $0x30] sm:$0xff] %vm317, 0.0
          %325 = vst.msk [vmem:[#allocation2 + $0x38] sm:$0xff] %vm317, 0.0
          %326 = vst.msk [vmem:[#allocation3] sm:$0xff] %vm317, 0.0
          %327 = vst.msk [vmem:[#allocation3 + $0x8] sm:$0xff] %vm317, 0.0
          %328 = vst.msk [vmem:[#allocation3 + $0x10] sm:$0xff] %vm317, 0.0
          %329 = vst.msk [vmem:[#allocation3 + $0x18] sm:$0xff] %vm317, 0.0
          %330 = vst.msk [vmem:[#allocation3 + $0x20] sm:$0xff] %vm317, 0.0
          %331 = vst.msk [vmem:[#allocation3 + $0x28] sm:$0xff] %vm317, 0.0
          %332 = vst.msk [vmem:[#allocation3 + $0x30] sm:$0xff] %vm317, 0.0
          %333 = vst.msk [vmem:[#allocation3 + $0x38] sm:$0xff] %vm317, 0.0
        $region48: #{tpu_custom_call.1} parent=43 // pred_fallthru
          _
        %v334 = vld [vmem:[%s311] sm:$0xf]
        %v335 = vld [vmem:[%s311 + $0x4] sm:$0xf]
        %v336 = vld [vmem:[%s311 + $0x8] sm:$0xf]
        %v337 = vld [vmem:[%s311 + $0xc] sm:$0xf]
        %v338 = vld [vmem:[%s311 + $0x10] sm:$0xf]
        %v339 = vld [vmem:[%s311 + $0x14] sm:$0xf]
        %v340 = vld [vmem:[%s311 + $0x18] sm:$0xf]
        %v341 = vld [vmem:[%s311 + $0x1c] sm:$0xf]
        %v342 = vunpack.c.l.bf16 %v334
        %v343 = vunpack.c.l.bf16 %v335
        %v344 = vunpack.c.l.bf16 %v336
        %v345 = vunpack.c.l.bf16 %v337
        %v346 = vunpack.c.l.bf16 %v338
        %v347 = vunpack.c.l.bf16 %v339
        %v348 = vunpack.c.l.bf16 %v340
        %v349 = vunpack.c.l.bf16 %v341
        %v350 = vld [vmem:[#allocation2] sm:$0xff]
        %v351 = vld [vmem:[#allocation2 + $0x8] sm:$0xff]
        %v352 = vld [vmem:[#allocation2 + $0x10] sm:$0xff]
        %v353 = vld [vmem:[#allocation2 + $0x18] sm:$0xff]
        %v354 = vld [vmem:[#allocation2 + $0x20] sm:$0xff]
        %v355 = vld [vmem:[#allocation2 + $0x28] sm:$0xff]
        %v356 = vld [vmem:[#allocation2 + $0x30] sm:$0xff]
        %v357 = vld [vmem:[#allocation2 + $0x38] sm:$0xff]
        %v358 = vld [vmem:[%s1] sm:$0xff]
        %v359 = vld [vmem:[%s1 + $0x8] sm:$0xff]
        %v360 = vld [vmem:[%s1 + $0x10] sm:$0xff]
        %v361 = vld [vmem:[%s1 + $0x18] sm:$0xff]
        %v362 = vld [vmem:[%s1 + $0x20] sm:$0xff]
        %v363 = vld [vmem:[%s1 + $0x28] sm:$0xff]
        %v364 = vld [vmem:[%s1 + $0x30] sm:$0xff]
        %v365 = vld [vmem:[%s1 + $0x38] sm:$0xff]
        %367 = vset.pattern.permute.xlu0 0
        %368 = vperm.xlu0 %367, %v358
        %v369 = vpop.permute.xlu0 %368
        %372 = vset.pattern.permute.xlu0 0
        %373 = vperm.xlu0 %372, %v359
        %v374 = vpop.permute.xlu0 %373
        %377 = vset.pattern.permute.xlu0 0
        %378 = vperm.xlu0 %377, %v360
        %v379 = vpop.permute.xlu0 %378
        %382 = vset.pattern.permute.xlu0 0
        %383 = vperm.xlu0 %382, %v361
        %v384 = vpop.permute.xlu0 %383
        %387 = vset.pattern.permute.xlu0 0
        %388 = vperm.xlu0 %387, %v362
        %v389 = vpop.permute.xlu0 %388
        %392 = vset.pattern.permute.xlu0 0
        %393 = vperm.xlu0 %392, %v363
        %v394 = vpop.permute.xlu0 %393
        %397 = vset.pattern.permute.xlu0 0
        %398 = vperm.xlu0 %397, %v364
        %v399 = vpop.permute.xlu0 %398
        %402 = vset.pattern.permute.xlu0 0
        %403 = vperm.xlu0 %402, %v365
        %v404 = vpop.permute.xlu0 %403
        %v406 = vmul.f32 %v357, %v369
        %v407 = vmul.f32 %v350, %v374
        %v408 = vmul.f32 %v351, %v379
        %v409 = vmul.f32 %v352, %v384
        %v410 = vmul.f32 %v353, %v389
        %v411 = vmul.f32 %v354, %v394
        %v412 = vmul.f32 %v355, %v399
        %v413 = vmul.f32 %v356, %v404
        %v414 = vpack.c.bf16 %v407, %v406
        %v415 = vpack.c.bf16 %v409, %v408
        %v416 = vpack.c.bf16 %v411, %v410
        %v417 = vpack.c.bf16 %v413, %v412
        %v418 = vld [vmem:[%s2] sm:$0xf]
        %v419 = vld [vmem:[%s2 + $0x4] sm:$0xf]
        %v420 = vld [vmem:[%s2 + $0x8] sm:$0xf]
        %v421 = vld [vmem:[%s2 + $0xc] sm:$0xf]
        %v426 = vunpack.c.l.b16 %v418
        %v427 = vunpack.c.l.b16 %v419
        %v428 = vunpack.c.l.b16 %v420
        %v429 = vunpack.c.l.b16 %v421
        %v430 = vpack.c.b16 %v427, %v426
        %v431 = vpack.c.b16 %v429, %v428
        %vm434 = vcmask 261120
        %v436 = vsel %vm434, %v414, 0
        %v439 = vsel %vm434, %v415, 0
        %v442 = vsel %vm434, %v416, 0
        %v445 = vsel %vm434, %v417, 0
        %447 = vmatprep.subr.bf16.mxu0 0
        %448 = vmatpush1.bf16.msra.mxu0 %v430
        %449 = vmatprep.subr.bf16.mxu0 0
        %450 = vmatpush1.bf16.msra.mxu0 %v431
        %451 = vmatprep.subr.bf16.mxu0 0
        %452 = vmatpush1.bf16.msra.mxu0 0
        %453 = vmatprep.subr.bf16.mxu0 0
        %454 = vmatpush1.bf16.msra.mxu0 0
        %455 = vmatprep.subr.bf16.mxu0 0
        %456 = vmatpush1.bf16.msra.mxu0 0
        %457 = vmatprep.subr.bf16.mxu0 0
        %458 = vmatpush1.bf16.msra.mxu0 0
        %459 = vmatprep.subr.bf16.mxu0 0
        %460 = vmatpush1.bf16.msra.mxu0 0
        %461 = vmatprep.subr.bf16.mxu0 0
        %462 = vmatpush1.bf16.msra.mxu0 0
        %463 = vmatprep.subr.bf16.mxu0 0
        %464 = vmatpush1.bf16.msra.mxu0 0
        %465 = vmatprep.subr.bf16.mxu0 0
        %466 = vmatpush1.bf16.msra.mxu0 0
        %467 = vmatprep.subr.bf16.mxu0 0
        %468 = vmatpush1.bf16.msra.mxu0 0
        %469 = vmatprep.subr.bf16.mxu0 0
        %470 = vmatpush1.bf16.msra.mxu0 0
        %471 = vmatprep.subr.bf16.mxu0 0
        %472 = vmatpush1.bf16.msra.mxu0 0
        %473 = vmatprep.subr.bf16.mxu0 0
        %474 = vmatpush1.bf16.msra.mxu0 0
        %475 = vmatprep.subr.bf16.mxu0 0
        %476 = vmatpush1.bf16.msra.mxu0 0
        %477 = vmatprep.subr.bf16.mxu0 0
        %478 = vmatpush1.bf16.msra.mxu0 0
        %479 = vmatprep.mubr.bf16.mxu0 0
        %480 = vmatmul.mubr.bf16.gmra.mrb[0].mxu0 %v436
        %v481 = vpop.f32.mrb[0].mxu0
        %v482 = vadd.f32 0.0, %v481
        %v483 = vpop.f32.mrb[0].mxu0
        %v484 = vpop.f32.mrb[0].mxu0
        %v485 = vadd.f32 0.0, %v484
        %v486 = vpop.f32.mrb[0].mxu0
        %487 = vmatprep.mubr.bf16.mxu0 0
        %488 = vmatmul.mubr.bf16.gmra.mrb[0].mxu0 %v439
        %v489 = vpop.f32.mrb[0].mxu0
        %v490 = vadd.f32 0.0, %v489
        %v491 = vpop.f32.mrb[0].mxu0
        %v492 = vpop.f32.mrb[0].mxu0
        %v493 = vadd.f32 0.0, %v492
        %v494 = vpop.f32.mrb[0].mxu0
        %495 = vmatprep.mubr.bf16.mxu0 0
        %496 = vmatmul.mubr.bf16.gmra.mrb[0].mxu0 %v442
        %v497 = vpop.f32.mrb[0].mxu0
        %v498 = vadd.f32 0.0, %v497
        %v499 = vpop.f32.mrb[0].mxu0
        %v500 = vpop.f32.mrb[0].mxu0
        %v501 = vadd.f32 0.0, %v500
        %v502 = vpop.f32.mrb[0].mxu0
        %503 = vmatprep.mubr.bf16.mxu0 0
        %504 = vmatmul.mubr.bf16.gmra.mrb[0].mxu0 %v445
        %v505 = vpop.f32.mrb[0].mxu0
        %v506 = vadd.f32 0.0, %v505
        %v507 = vpop.f32.mrb[0].mxu0
        %v508 = vpop.f32.mrb[0].mxu0
        %v509 = vadd.f32 0.0, %v508
        %v510 = vpop.f32.mrb[0].mxu0
        %511 = vdwg.mxu0
        %v512 = vadd.f32 %v342, %v482
        %v513 = vadd.f32 %v343, %v485
        %v514 = vadd.f32 %v344, %v490
        %v515 = vadd.f32 %v345, %v493
        %v516 = vadd.f32 %v346, %v498
        %v517 = vadd.f32 %v347, %v501
        %v518 = vadd.f32 %v348, %v506
        %v519 = vadd.f32 %v349, %v509
        %v520 = vrot.slane %v350, 1
        %v521 = vrot.slane %v351, 1
        %v522 = vrot.slane %v352, 1
        %v523 = vrot.slane %v353, 1
        %v524 = vrot.slane %v354, 1
        %v525 = vrot.slane %v355, 1
        %v526 = vrot.slane %v356, 1
        %v527 = vrot.slane %v357, 1
        %v528 = vlaneseq
        %v529 = vshrl.u32 %v528, 7
        %vm530 = vcmp.lt.s32.totalorder %v529, 7
        %v531 = vsel %vm530, %v526, %v527
        %v532 = vsel %vm530, %v525, %v526
        %v533 = vsel %vm530, %v524, %v525
        %v534 = vsel %vm530, %v523, %v524
        %v535 = vsel %vm530, %v522, %v523
        %v536 = vsel %vm530, %v521, %v522
        %v537 = vsel %vm530, %v520, %v521
        %v538 = vsel %vm530, %v527, %v520
        %s539 = scalar_lea.vmem %s1, 64
        %v540 = vld [vmem:[%s539] sm:$0xff]
        %v541 = vld [vmem:[%s539 + $0x8] sm:$0xff]
        %v542 = vld [vmem:[%s539 + $0x10] sm:$0xff]
        %v543 = vld [vmem:[%s539 + $0x18] sm:$0xff]
        %v544 = vld [vmem:[%s539 + $0x20] sm:$0xff]
        %v545 = vld [vmem:[%s539 + $0x28] sm:$0xff]
        %v546 = vld [vmem:[%s539 + $0x30] sm:$0xff]
        %v547 = vld [vmem:[%s539 + $0x38] sm:$0xff]
        %549 = vset.pattern.permute.xlu0 0
        %550 = vperm.xlu0 %549, %v540
        %v551 = vpop.permute.xlu0 %550
        %554 = vset.pattern.permute.xlu0 0
        %555 = vperm.xlu0 %554, %v541
        %v556 = vpop.permute.xlu0 %555
        %559 = vset.pattern.permute.xlu0 0
        %560 = vperm.xlu0 %559, %v542
        %v561 = vpop.permute.xlu0 %560
        %564 = vset.pattern.permute.xlu0 0
        %565 = vperm.xlu0 %564, %v543
        %v566 = vpop.permute.xlu0 %565
        %569 = vset.pattern.permute.xlu0 0
        %570 = vperm.xlu0 %569, %v544
        %v571 = vpop.permute.xlu0 %570
        %574 = vset.pattern.permute.xlu0 0
        %575 = vperm.xlu0 %574, %v545
        %v576 = vpop.permute.xlu0 %575
        %579 = vset.pattern.permute.xlu0 0
        %580 = vperm.xlu0 %579, %v546
        %v581 = vpop.permute.xlu0 %580
        %584 = vset.pattern.permute.xlu0 0
        %585 = vperm.xlu0 %584, %v547
        %v586 = vpop.permute.xlu0 %585
        %v588 = vmul.f32 %v538, %v551
        %v589 = vmul.f32 %v537, %v556
        %v590 = vmul.f32 %v536, %v561
        %v591 = vmul.f32 %v535, %v566
        %v592 = vmul.f32 %v534, %v571
        %v593 = vmul.f32 %v533, %v576
        %v594 = vmul.f32 %v532, %v581
        %v595 = vmul.f32 %v531, %v586
        %v596 = vpack.c.bf16 %v589, %v588
        %v597 = vpack.c.bf16 %v591, %v590
        %v598 = vpack.c.bf16 %v593, %v592
        %v599 = vpack.c.bf16 %v595, %v594
        %s600 = scalar_lea.vmem %s2, 16
        %v601 = vld [vmem:[%s600] sm:$0xf]
        %v602 = vld [vmem:[%s600 + $0x4] sm:$0xf]
        %v603 = vld [vmem:[%s600 + $0x8] sm:$0xf]
        %v604 = vld [vmem:[%s600 + $0xc] sm:$0xf]
        %v609 = vunpack.c.l.b16 %v601
        %v610 = vunpack.c.l.b16 %v602
        %v611 = vunpack.c.l.b16 %v603
        %v612 = vunpack.c.l.b16 %v604
        %v613 = vpack.c.b16 %v610, %v609
        %v614 = vpack.c.b16 %v612, %v611
        %v618 = vsel %vm434, %v596, 0
        %v621 = vsel %vm434, %v597, 0
        %v624 = vsel %vm434, %v598, 0
        %v627 = vsel %vm434, %v599, 0
        %629 = vmatprep.subr.bf16.mxu0 0
        %630 = vmatpush1.bf16.msra.mxu0 %v613
        %631 = vmatprep.subr.bf16.mxu0 0
        %632 = vmatpush1.bf16.msra.mxu0 %v614
        %633 = vmatprep.subr.bf16.mxu0 0
        %634 = vmatpush1.bf16.msra.mxu0 0
        %635 = vmatprep.subr.bf16.mxu0 0
        %636 = vmatpush1.bf16.msra.mxu0 0
        %637 = vmatprep.subr.bf16.mxu0 0
        %638 = vmatpush1.bf16.msra.mxu0 0
        %639 = vmatprep.subr.bf16.mxu0 0
        %640 = vmatpush1.bf16.msra.mxu0 0
        %641 = vmatprep.subr.bf16.mxu0 0
        %642 = vmatpush1.bf16.msra.mxu0 0
        %643 = vmatprep.subr.bf16.mxu0 0
        %644 = vmatpush1.bf16.msra.mxu0 0
        %645 = vmatprep.subr.bf16.mxu0 0
        %646 = vmatpush1.bf16.msra.mxu0 0
        %647 = vmatprep.subr.bf16.mxu0 0
        %648 = vmatpush1.bf16.msra.mxu0 0
        %649 = vmatprep.subr.bf16.mxu0 0
        %650 = vmatpush1.bf16.msra.mxu0 0
        %651 = vmatprep.subr.bf16.mxu0 0
        %652 = vmatpush1.bf16.msra.mxu0 0
        %653 = vmatprep.subr.bf16.mxu0 0
        %654 = vmatpush1.bf16.msra.mxu0 0
        %655 = vmatprep.subr.bf16.mxu0 0
        %656 = vmatpush1.bf16.msra.mxu0 0
        %657 = vmatprep.subr.bf16.mxu0 0
        %658 = vmatpush1.bf16.msra.mxu0 0
        %659 = vmatprep.subr.bf16.mxu0 0
        %660 = vmatpush1.bf16.msra.mxu0 0
        %661 = vmatprep.mubr.bf16.mxu0 0
        %662 = vmatmul.mubr.bf16.gmra.mrb[0].mxu0 %v618
        %v663 = vpop.f32.mrb[0].mxu0
        %v664 = vadd.f32 0.0, %v663
        %v665 = vpop.f32.mrb[0].mxu0
        %v666 = vpop.f32.mrb[0].mxu0
        %v667 = vadd.f32 0.0, %v666
        %v668 = vpop.f32.mrb[0].mxu0
        %669 = vmatprep.mubr.bf16.mxu0 0
        %670 = vmatmul.mubr.bf16.gmra.mrb[0].mxu0 %v621
        %v671 = vpop.f32.mrb[0].mxu0
        %v672 = vadd.f32 0.0, %v671
        %v673 = vpop.f32.mrb[0].mxu0
        %v674 = vpop.f32.mrb[0].mxu0
        %v675 = vadd.f32 0.0, %v674
        %v676 = vpop.f32.mrb[0].mxu0
        %677 = vmatprep.mubr.bf16.mxu0 0
        %678 = vmatmul.mubr.bf16.gmra.mrb[0].mxu0 %v624
        %v679 = vpop.f32.mrb[0].mxu0
        %v680 = vadd.f32 0.0, %v679
        %v681 = vpop.f32.mrb[0].mxu0
        %v682 = vpop.f32.mrb[0].mxu0
        %v683 = vadd.f32 0.0, %v682
        %v684 = vpop.f32.mrb[0].mxu0
        %685 = vmatprep.mubr.bf16.mxu0 0
        %686 = vmatmul.mubr.bf16.gmra.mrb[0].mxu0 %v627
        %v687 = vpop.f32.mrb[0].mxu0
        %v688 = vadd.f32 0.0, %v687
        %v689 = vpop.f32.mrb[0].mxu0
        %v690 = vpop.f32.mrb[0].mxu0
        %v691 = vadd.f32 0.0, %v690
        %v692 = vpop.f32.mrb[0].mxu0
        %693 = vdwg.mxu0
        %v694 = vadd.f32 %v512, %v664
        %v695 = vadd.f32 %v513, %v667
        %v696 = vadd.f32 %v514, %v672
        %v697 = vadd.f32 %v515, %v675
        %v698 = vadd.f32 %v516, %v680
        %v699 = vadd.f32 %v517, %v683
        %v700 = vadd.f32 %v518, %v688
        %v701 = vadd.f32 %v519, %v691
        %v702 = vrot.slane %v350, 2
        %v703 = vrot.slane %v351, 2
        %v704 = vrot.slane %v352, 2
        %v705 = vrot.slane %v353, 2
        %v706 = vrot.slane %v354, 2
        %v707 = vrot.slane %v355, 2
        %v708 = vrot.slane %v356, 2
        %v709 = vrot.slane %v357, 2
        %vm710 = vcmp.lt.s32.totalorder %v529, 6
        %v711 = vsel %vm710, %v708, %v709
        %v712 = vsel %vm710, %v707, %v708
        %v713 = vsel %vm710, %v706, %v707
        %v714 = vsel %vm710, %v705, %v706
        %v715 = vsel %vm710, %v704, %v705
        %v716 = vsel %vm710, %v703, %v704
        %v717 = vsel %vm710, %v702, %v703
        %v718 = vsel %vm710, %v709, %v702
        %s719 = scalar_lea.vmem %s1, 128
        %v720 = vld [vmem:[%s719] sm:$0xff]
        %v721 = vld [vmem:[%s719 + $0x8] sm:$0xff]
        %v722 = vld [vmem:[%s719 + $0x10] sm:$0xff]
        %v723 = vld [vmem:[%s719 + $0x18] sm:$0xff]
        %v724 = vld [vmem:[%s719 + $0x20] sm:$0xff]
        %v725 = vld [vmem:[%s719 + $0x28] sm:$0xff]
        %v726 = vld [vmem:[%s719 + $0x30] sm:$0xff]
        %v727 = vld [vmem:[%s719 + $0x38] sm:$0xff]
        %729 = vset.pattern.permute.xlu0 0
        %730 = vperm.xlu0 %729, %v720
        %v731 = vpop.permute.xlu0 %730
        %734 = vset.pattern.permute.xlu0 0
        %735 = vperm.xlu0 %734, %v721
        %v736 = vpop.permute.xlu0 %735
        %739 = vset.pattern.permute.xlu0 0
        %740 = vperm.xlu0 %739, %v722
        %v741 = vpop.permute.xlu0 %740
        %744 = vset.pattern.permute.xlu0 0
        %745 = vperm.xlu0 %744, %v723
        %v746 = vpop.permute.xlu0 %745
        %749 = vset.pattern.permute.xlu0 0
        %750 = vperm.xlu0 %749, %v724
        %v751 = vpop.permute.xlu0 %750
        %754 = vset.pattern.permute.xlu0 0
        %755 = vperm.xlu0 %754, %v725
        %v756 = vpop.permute.xlu0 %755
        %759 = vset.pattern.permute.xlu0 0
        %760 = vperm.xlu0 %759, %v726
        %v761 = vpop.permute.xlu0 %760
        %764 = vset.pattern.permute.xlu0 0
        %765 = vperm.xlu0 %764, %v727
        %v766 = vpop.permute.xlu0 %765
        %v768 = vmul.f32 %v718, %v731
        %v769 = vmul.f32 %v717, %v736
        %v770 = vmul.f32 %v716, %v741
        %v771 = vmul.f32 %v715, %v746
        %v772 = vmul.f32 %v714, %v751
        %v773 = vmul.f32 %v713, %v756
        %v774 = vmul.f32 %v712, %v761
        %v775 = vmul.f32 %v711, %v766
        %v776 = vpack.c.bf16 %v769, %v768
        %v777 = vpack.c.bf16 %v771, %v770
        %v778 = vpack.c.bf16 %v773, %v772
        %v779 = vpack.c.bf16 %v775, %v774
        %s780 = scalar_lea.vmem %s2, 32
        %v781 = vld [vmem:[%s780] sm:$0xf]
        %v782 = vld [vmem:[%s780 + $0x4] sm:$0xf]
        %v783 = vld [vmem:[%s780 + $0x8] sm:$0xf]
        %v784 = vld [vmem:[%s780 + $0xc] sm:$0xf]
        %v789 = vunpack.c.l.b16 %v781
        %v790 = vunpack.c.l.b16 %v782
        %v791 = vunpack.c.l.b16 %v783
        %v792 = vunpack.c.l.b16 %v784
        %v793 = vpack.c.b16 %v790, %v789
        %v794 = vpack.c.b16 %v792, %v791
        %v798 = vsel %vm434, %v776, 0
        %v801 = vsel %vm434, %v777, 0
        %v804 = vsel %vm434, %v778, 0
        %v807 = vsel %vm434, %v779, 0
        %809 = vmatprep.subr.bf16.mxu0 0
        %810 = vmatpush1.bf16.msra.mxu0 %v793
        %811 = vmatprep.subr.bf16.mxu0 0
        %812 = vmatpush1.bf16.msra.mxu0 %v794
        %813 = vmatprep.subr.bf16.mxu0 0
        %814 = vmatpush1.bf16.msra.mxu0 0
        %815 = vmatprep.subr.bf16.mxu0 0
        %816 = vmatpush1.bf16.msra.mxu0 0
        %817 = vmatprep.subr.bf16.mxu0 0
        %818 = vmatpush1.bf16.msra.mxu0 0
        %819 = vmatprep.subr.bf16.mxu0 0
        %820 = vmatpush1.bf16.msra.mxu0 0
        %821 = vmatprep.subr.bf16.mxu0 0
        %822 = vmatpush1.bf16.msra.mxu0 0
        %823 = vmatprep.subr.bf16.mxu0 0
        %824 = vmatpush1.bf16.msra.mxu0 0
        %825 = vmatprep.subr.bf16.mxu0 0
        %826 = vmatpush1.bf16.msra.mxu0 0
        %827 = vmatprep.subr.bf16.mxu0 0
        %828 = vmatpush1.bf16.msra.mxu0 0
        %829 = vmatprep.subr.bf16.mxu0 0
        %830 = vmatpush1.bf16.msra.mxu0 0
        %831 = vmatprep.subr.bf16.mxu0 0
        %832 = vmatpush1.bf16.msra.mxu0 0
        %833 = vmatprep.subr.bf16.mxu0 0
        %834 = vmatpush1.bf16.msra.mxu0 0
        %835 = vmatprep.subr.bf16.mxu0 0
        %836 = vmatpush1.bf16.msra.mxu0 0
        %837 = vmatprep.subr.bf16.mxu0 0
        %838 = vmatpush1.bf16.msra.mxu0 0
        %839 = vmatprep.subr.bf16.mxu0 0
        %840 = vmatpush1.bf16.msra.mxu0 0
        %841 = vmatprep.mubr.bf16.mxu0 0
        %842 = vmatmul.mubr.bf16.gmra.mrb[0].mxu0 %v798
        %v843 = vpop.f32.mrb[0].mxu0
        %v844 = vadd.f32 0.0, %v843
        %v845 = vpop.f32.mrb[0].mxu0
        %v846 = vpop.f32.mrb[0].mxu0
        %v847 = vadd.f32 0.0, %v846
        %v848 = vpop.f32.mrb[0].mxu0
        %849 = vmatprep.mubr.bf16.mxu0 0
        %850 = vmatmul.mubr.bf16.gmra.mrb[0].mxu0 %v801
        %v851 = vpop.f32.mrb[0].mxu0
        %v852 = vadd.f32 0.0, %v851
        %v853 = vpop.f32.mrb[0].mxu0
        %v854 = vpop.f32.mrb[0].mxu0
        %v855 = vadd.f32 0.0, %v854
        %v856 = vpop.f32.mrb[0].mxu0
        %857 = vmatprep.mubr.bf16.mxu0 0
        %858 = vmatmul.mubr.bf16.gmra.mrb[0].mxu0 %v804
        %v859 = vpop.f32.mrb[0].mxu0
        %v860 = vadd.f32 0.0, %v859
        %v861 = vpop.f32.mrb[0].mxu0
        %v862 = vpop.f32.mrb[0].mxu0
        %v863 = vadd.f32 0.0, %v862
        %v864 = vpop.f32.mrb[0].mxu0
        %865 = vmatprep.mubr.bf16.mxu0 0
        %866 = vmatmul.mubr.bf16.gmra.mrb[0].mxu0 %v807
        %v867 = vpop.f32.mrb[0].mxu0
        %v868 = vadd.f32 0.0, %v867
        %v869 = vpop.f32.mrb[0].mxu0
        %v870 = vpop.f32.mrb[0].mxu0
        %v871 = vadd.f32 0.0, %v870
        %v872 = vpop.f32.mrb[0].mxu0
        %873 = vdwg.mxu0
        %v874 = vadd.f32 %v694, %v844
        %v875 = vadd.f32 %v695, %v847
        %v876 = vadd.f32 %v696, %v852
        %v877 = vadd.f32 %v697, %v855
        %v878 = vadd.f32 %v698, %v860
        %v879 = vadd.f32 %v699, %v863
        %v880 = vadd.f32 %v700, %v868
        %v881 = vadd.f32 %v701, %v871
        %v882 = vrot.slane %v350, 7
        %v883 = vrot.slane %v351, 7
        %v884 = vrot.slane %v352, 7
        %v885 = vrot.slane %v353, 7
        %v886 = vrot.slane %v354, 7
        %v887 = vrot.slane %v355, 7
        %v888 = vrot.slane %v356, 7
        %v889 = vrot.slane %v357, 7
        %vm890 = vcmp.lt.s32.totalorder %v529, 1
        %v891 = vsel %vm890, %v888, %v889
        %v892 = vsel %vm890, %v887, %v888
        %v893 = vsel %vm890, %v886, %v887
        %v894 = vsel %vm890, %v885, %v886
        %v895 = vsel %vm890, %v884, %v885
        %v896 = vsel %vm890, %v883, %v884
        %v897 = vsel %vm890, %v882, %v883
        %v898 = vsel %vm890, %v889, %v882
        %s899 = scalar_lea.vmem %s1, 192
        %v900 = vld [vmem:[%s899] sm:$0xff]
        %v901 = vld [vmem:[%s899 + $0x8] sm:$0xff]
        %v902 = vld [vmem:[%s899 + $0x10] sm:$0xff]
        %v903 = vld [vmem:[%s899 + $0x18] sm:$0xff]
        %v904 = vld [vmem:[%s899 + $0x20] sm:$0xff]
        %v905 = vld [vmem:[%s899 + $0x28] sm:$0xff]
        %v906 = vld [vmem:[%s899 + $0x30] sm:$0xff]
        %v907 = vld [vmem:[%s899 + $0x38] sm:$0xff]
        %909 = vset.pattern.permute.xlu0 0
        %910 = vperm.xlu0 %909, %v900
        %v911 = vpop.permute.xlu0 %910
        %914 = vset.pattern.permute.xlu0 0
        %915 = vperm.xlu0 %914, %v901
        %v916 = vpop.permute.xlu0 %915
        %919 = vset.pattern.permute.xlu0 0
        %920 = vperm.xlu0 %919, %v902
        %v921 = vpop.permute.xlu0 %920
        %924 = vset.pattern.permute.xlu0 0
        %925 = vperm.xlu0 %924, %v903
        %v926 = vpop.permute.xlu0 %925
        %929 = vset.pattern.permute.xlu0 0
        %930 = vperm.xlu0 %929, %v904
        %v931 = vpop.permute.xlu0 %930
        %934 = vset.pattern.permute.xlu0 0
        %935 = vperm.xlu0 %934, %v905
        %v936 = vpop.permute.xlu0 %935
        %939 = vset.pattern.permute.xlu0 0
        %940 = vperm.xlu0 %939, %v906
        %v941 = vpop.permute.xlu0 %940
        %944 = vset.pattern.permute.xlu0 0
        %945 = vperm.xlu0 %944, %v907
        %v946 = vpop.permute.xlu0 %945
        %v948 = vmul.f32 %v898, %v911
        %v949 = vmul.f32 %v897, %v916
        %v950 = vmul.f32 %v896, %v921
        %v951 = vmul.f32 %v895, %v926
        %v952 = vmul.f32 %v894, %v931
        %v953 = vmul.f32 %v893, %v936
        %v954 = vmul.f32 %v892, %v941
        %v955 = vmul.f32 %v891, %v946
        %v956 = vpack.c.bf16 %v949, %v948
        %v957 = vpack.c.bf16 %v951, %v950
        %v958 = vpack.c.bf16 %v953, %v952
        %v959 = vpack.c.bf16 %v955, %v954
        %s960 = scalar_lea.vmem %s2, 48
        %v961 = vld [vmem:[%s960] sm:$0xf]
        %v962 = vld [vmem:[%s960 + $0x4] sm:$0xf]
        %v963 = vld [vmem:[%s960 + $0x8] sm:$0xf]
        %v964 = vld [vmem:[%s960 + $0xc] sm:$0xf]
        %v969 = vunpack.c.l.b16 %v961
        %v970 = vunpack.c.l.b16 %v962
        %v971 = vunpack.c.l.b16 %v963
        %v972 = vunpack.c.l.b16 %v964
        %v973 = vpack.c.b16 %v970, %v969
        %v974 = vpack.c.b16 %v972, %v971
        %v978 = vsel %vm434, %v956, 0
        %v981 = vsel %vm434, %v957, 0
        %v984 = vsel %vm434, %v958, 0
        %v987 = vsel %vm434, %v959, 0
        %989 = vmatprep.subr.bf16.mxu0 0
        %990 = vmatpush1.bf16.msra.mxu0 %v973
        %991 = vmatprep.subr.bf16.mxu0 0
        %992 = vmatpush1.bf16.msra.mxu0 %v974
        %993 = vmatprep.subr.bf16.mxu0 0
        %994 = vmatpush1.bf16.msra.mxu0 0
        %995 = vmatprep.subr.bf16.mxu0 0
        %996 = vmatpush1.bf16.msra.mxu0 0
        %997 = vmatprep.subr.bf16.mxu0 0
        %998 = vmatpush1.bf16.msra.mxu0 0
        %999 = vmatprep.subr.bf16.mxu0 0
        %1000 = vmatpush1.bf16.msra.mxu0 0
        %1001 = vmatprep.subr.bf16.mxu0 0
        %1002 = vmatpush1.bf16.msra.mxu0 0
        %1003 = vmatprep.subr.bf16.mxu0 0
        %1004 = vmatpush1.bf16.msra.mxu0 0
        %1005 = vmatprep.subr.bf16.mxu0 0
        %1006 = vmatpush1.bf16.msra.mxu0 0
        %1007 = vmatprep.subr.bf16.mxu0 0
        %1008 = vmatpush1.bf16.msra.mxu0 0
        %1009 = vmatprep.subr.bf16.mxu0 0
        %1010 = vmatpush1.bf16.msra.mxu0 0
        %1011 = vmatprep.subr.bf16.mxu0 0
        %1012 = vmatpush1.bf16.msra.mxu0 0
        %1013 = vmatprep.subr.bf16.mxu0 0
        %1014 = vmatpush1.bf16.msra.mxu0 0
        %1015 = vmatprep.subr.bf16.mxu0 0
        %1016 = vmatpush1.bf16.msra.mxu0 0
        %1017 = vmatprep.subr.bf16.mxu0 0
        %1018 = vmatpush1.bf16.msra.mxu0 0
        %1019 = vmatprep.subr.bf16.mxu0 0
        %1020 = vmatpush1.bf16.msra.mxu0 0
        %1021 = vmatprep.mubr.bf16.mxu0 0
        %1022 = vmatmul.mubr.bf16.gmra.mrb[0].mxu0 %v978
        %v1023 = vpop.f32.mrb[0].mxu0
        %v1024 = vadd.f32 0.0, %v1023
        %v1025 = vpop.f32.mrb[0].mxu0
        %v1026 = vpop.f32.mrb[0].mxu0
        %v1027 = vadd.f32 0.0, %v1026
        %v1028 = vpop.f32.mrb[0].mxu0
        %1029 = vmatprep.mubr.bf16.mxu0 0
        %1030 = vmatmul.mubr.bf16.gmra.mrb[0].mxu0 %v981
        %v1031 = vpop.f32.mrb[0].mxu0
        %v1032 = vadd.f32 0.0, %v1031
        %v1033 = vpop.f32.mrb[0].mxu0
        %v1034 = vpop.f32.mrb[0].mxu0
        %v1035 = vadd.f32 0.0, %v1034
        %v1036 = vpop.f32.mrb[0].mxu0
        %1037 = vmatprep.mubr.bf16.mxu0 0
        %1038 = vmatmul.mubr.bf16.gmra.mrb[0].mxu0 %v984
        %v1039 = vpop.f32.mrb[0].mxu0
        %v1040 = vadd.f32 0.0, %v1039
        %v1041 = vpop.f32.mrb[0].mxu0
        %v1042 = vpop.f32.mrb[0].mxu0
        %v1043 = vadd.f32 0.0, %v1042
        %v1044 = vpop.f32.mrb[0].mxu0
        %1045 = vmatprep.mubr.bf16.mxu0 0
        %1046 = vmatmul.mubr.bf16.gmra.mrb[0].mxu0 %v987
        %v1047 = vpop.f32.mrb[0].mxu0
        %v1048 = vadd.f32 0.0, %v1047
        %v1049 = vpop.f32.mrb[0].mxu0
        %v1050 = vpop.f32.mrb[0].mxu0
        %v1051 = vadd.f32 0.0, %v1050
        %v1052 = vpop.f32.mrb[0].mxu0
        %1053 = vdwg.mxu0
        %v1054 = vadd.f32 %v874, %v1024
        %v1055 = vadd.f32 %v875, %v1027
        %v1056 = vadd.f32 %v876, %v1032
        %v1057 = vadd.f32 %v877, %v1035
        %v1058 = vadd.f32 %v878, %v1040
        %v1059 = vadd.f32 %v879, %v1043
        %v1060 = vadd.f32 %v880, %v1048
        %v1061 = vadd.f32 %v881, %v1051
        %s1062 = scalar_lea.vmem %s1, 256
        %v1063 = vld [vmem:[%s1062] sm:$0xff]
        %v1064 = vld [vmem:[%s1062 + $0x8] sm:$0xff]
        %v1065 = vld [vmem:[%s1062 + $0x10] sm:$0xff]
        %v1066 = vld [vmem:[%s1062 + $0x18] sm:$0xff]
        %v1067 = vld [vmem:[%s1062 + $0x20] sm:$0xff]
        %v1068 = vld [vmem:[%s1062 + $0x28] sm:$0xff]
        %v1069 = vld [vmem:[%s1062 + $0x30] sm:$0xff]
        %v1070 = vld [vmem:[%s1062 + $0x38] sm:$0xff]
        %1072 = vset.pattern.permute.xlu0 0
        %1073 = vperm.xlu0 %1072, %v1063
        %v1074 = vpop.permute.xlu0 %1073
        %1077 = vset.pattern.permute.xlu0 0
        %1078 = vperm.xlu0 %1077, %v1064
        %v1079 = vpop.permute.xlu0 %1078
        %1082 = vset.pattern.permute.xlu0 0
        %1083 = vperm.xlu0 %1082, %v1065
        %v1084 = vpop.permute.xlu0 %1083
        %1087 = vset.pattern.permute.xlu0 0
        %1088 = vperm.xlu0 %1087, %v1066
        %v1089 = vpop.permute.xlu0 %1088
        %1092 = vset.pattern.permute.xlu0 0
        %1093 = vperm.xlu0 %1092, %v1067
        %v1094 = vpop.permute.xlu0 %1093
        %1097 = vset.pattern.permute.xlu0 0
        %1098 = vperm.xlu0 %1097, %v1068
        %v1099 = vpop.permute.xlu0 %1098
        %1102 = vset.pattern.permute.xlu0 0
        %1103 = vperm.xlu0 %1102, %v1069
        %v1104 = vpop.permute.xlu0 %1103
        %1107 = vset.pattern.permute.xlu0 0
        %1108 = vperm.xlu0 %1107, %v1070
        %v1109 = vpop.permute.xlu0 %1108
        %v1111 = vmul.f32 %v350, %v1074
        %v1112 = vmul.f32 %v351, %v1079
        %v1113 = vmul.f32 %v352, %v1084
        %v1114 = vmul.f32 %v353, %v1089
        %v1115 = vmul.f32 %v354, %v1094
        %v1116 = vmul.f32 %v355, %v1099
        %v1117 = vmul.f32 %v356, %v1104
        %v1118 = vmul.f32 %v357, %v1109
        %v1119 = vpack.c.bf16 %v1112, %v1111
        %v1120 = vpack.c.bf16 %v1114, %v1113
        %v1121 = vpack.c.bf16 %v1116, %v1115
        %v1122 = vpack.c.bf16 %v1118, %v1117
        %s1123 = scalar_lea.vmem %s2, 64
        %v1124 = vld [vmem:[%s1123] sm:$0xf]
        %v1125 = vld [vmem:[%s1123 + $0x4] sm:$0xf]
        %v1126 = vld [vmem:[%s1123 + $0x8] sm:$0xf]
        %v1127 = vld [vmem:[%s1123 + $0xc] sm:$0xf]
        %v1132 = vunpack.c.l.b16 %v1124
        %v1133 = vunpack.c.l.b16 %v1125
        %v1134 = vunpack.c.l.b16 %v1126
        %v1135 = vunpack.c.l.b16 %v1127
        %v1136 = vpack.c.b16 %v1133, %v1132
        %v1137 = vpack.c.b16 %v1135, %v1134
        %v1141 = vsel %vm434, %v1119, 0
        %v1144 = vsel %vm434, %v1120, 0
        %v1147 = vsel %vm434, %v1121, 0
        %v1150 = vsel %vm434, %v1122, 0
        %1152 = vmatprep.subr.bf16.mxu0 0
        %1153 = vmatpush1.bf16.msra.mxu0 %v1136
        %1154 = vmatprep.subr.bf16.mxu0 0
        %1155 = vmatpush1.bf16.msra.mxu0 %v1137
        %1156 = vmatprep.subr.bf16.mxu0 0
        %1157 = vmatpush1.bf16.msra.mxu0 0
        %1158 = vmatprep.subr.bf16.mxu0 0
        %1159 = vmatpush1.bf16.msra.mxu0 0
        %1160 = vmatprep.subr.bf16.mxu0 0
        %1161 = vmatpush1.bf16.msra.mxu0 0
        %1162 = vmatprep.subr.bf16.mxu0 0
        %1163 = vmatpush1.bf16.msra.mxu0 0
        %1164 = vmatprep.subr.bf16.mxu0 0
        %1165 = vmatpush1.bf16.msra.mxu0 0
        %1166 = vmatprep.subr.bf16.mxu0 0
        %1167 = vmatpush1.bf16.msra.mxu0 0
        %1168 = vmatprep.subr.bf16.mxu0 0
        %1169 = vmatpush1.bf16.msra.mxu0 0
        %1170 = vmatprep.subr.bf16.mxu0 0
        %1171 = vmatpush1.bf16.msra.mxu0 0
        %1172 = vmatprep.subr.bf16.mxu0 0
        %1173 = vmatpush1.bf16.msra.mxu0 0
        %1174 = vmatprep.subr.bf16.mxu0 0
        %1175 = vmatpush1.bf16.msra.mxu0 0
        %1176 = vmatprep.subr.bf16.mxu0 0
        %1177 = vmatpush1.bf16.msra.mxu0 0
        %1178 = vmatprep.subr.bf16.mxu0 0
        %1179 = vmatpush1.bf16.msra.mxu0 0
        %1180 = vmatprep.subr.bf16.mxu0 0
        %1181 = vmatpush1.bf16.msra.mxu0 0
        %1182 = vmatprep.subr.bf16.mxu0 0
        %1183 = vmatpush1.bf16.msra.mxu0 0
        %1184 = vmatprep.mubr.bf16.mxu0 0
        %1185 = vmatmul.mubr.bf16.gmra.mrb[0].mxu0 %v1141
        %v1186 = vpop.f32.mrb[0].mxu0
        %v1187 = vadd.f32 0.0, %v1186
        %v1188 = vpop.f32.mrb[0].mxu0
        %v1189 = vpop.f32.mrb[0].mxu0
        %v1190 = vadd.f32 0.0, %v1189
        %v1191 = vpop.f32.mrb[0].mxu0
        %1192 = vmatprep.mubr.bf16.mxu0 0
        %1193 = vmatmul.mubr.bf16.gmra.mrb[0].mxu0 %v1144
        %v1194 = vpop.f32.mrb[0].mxu0
        %v1195 = vadd.f32 0.0, %v1194
        %v1196 = vpop.f32.mrb[0].mxu0
        %v1197 = vpop.f32.mrb[0].mxu0
        %v1198 = vadd.f32 0.0, %v1197
        %v1199 = vpop.f32.mrb[0].mxu0
        %1200 = vmatprep.mubr.bf16.mxu0 0
        %1201 = vmatmul.mubr.bf16.gmra.mrb[0].mxu0 %v1147
        %v1202 = vpop.f32.mrb[0].mxu0
        %v1203 = vadd.f32 0.0, %v1202
        %v1204 = vpop.f32.mrb[0].mxu0
        %v1205 = vpop.f32.mrb[0].mxu0
        %v1206 = vadd.f32 0.0, %v1205
        %v1207 = vpop.f32.mrb[0].mxu0
        %1208 = vmatprep.mubr.bf16.mxu0 0
        %1209 = vmatmul.mubr.bf16.gmra.mrb[0].mxu0 %v1150
        %v1210 = vpop.f32.mrb[0].mxu0
        %v1211 = vadd.f32 0.0, %v1210
        %v1212 = vpop.f32.mrb[0].mxu0
        %v1213 = vpop.f32.mrb[0].mxu0
        %v1214 = vadd.f32 0.0, %v1213
        %v1215 = vpop.f32.mrb[0].mxu0
        %1216 = vdwg.mxu0
        %v1217 = vadd.f32 %v1054, %v1187
        %v1218 = vadd.f32 %v1055, %v1190
        %v1219 = vadd.f32 %v1056, %v1195
        %v1220 = vadd.f32 %v1057, %v1198
        %v1221 = vadd.f32 %v1058, %v1203
        %v1222 = vadd.f32 %v1059, %v1206
        %v1223 = vadd.f32 %v1060, %v1211
        %v1224 = vadd.f32 %v1061, %v1214
        %s1225 = scalar_lea.vmem %s1, 320
        %v1226 = vld [vmem:[%s1225] sm:$0xff]
        %v1227 = vld [vmem:[%s1225 + $0x8] sm:$0xff]
        %v1228 = vld [vmem:[%s1225 + $0x10] sm:$0xff]
        %v1229 = vld [vmem:[%s1225 + $0x18] sm:$0xff]
        %v1230 = vld [vmem:[%s1225 + $0x20] sm:$0xff]
        %v1231 = vld [vmem:[%s1225 + $0x28] sm:$0xff]
        %v1232 = vld [vmem:[%s1225 + $0x30] sm:$0xff]
        %v1233 = vld [vmem:[%s1225 + $0x38] sm:$0xff]
        %1235 = vset.pattern.permute.xlu0 0
        %1236 = vperm.xlu0 %1235, %v1226
        %v1237 = vpop.permute.xlu0 %1236
        %1240 = vset.pattern.permute.xlu0 0
        %1241 = vperm.xlu0 %1240, %v1227
        %v1242 = vpop.permute.xlu0 %1241
        %1245 = vset.pattern.permute.xlu0 0
        %1246 = vperm.xlu0 %1245, %v1228
        %v1247 = vpop.permute.xlu0 %1246
        %1250 = vset.pattern.permute.xlu0 0
        %1251 = vperm.xlu0 %1250, %v1229
        %v1252 = vpop.permute.xlu0 %1251
        %1255 = vset.pattern.permute.xlu0 0
        %1256 = vperm.xlu0 %1255, %v1230
        %v1257 = vpop.permute.xlu0 %1256
        %1260 = vset.pattern.permute.xlu0 0
        %1261 = vperm.xlu0 %1260, %v1231
        %v1262 = vpop.permute.xlu0 %1261
        %1265 = vset.pattern.permute.xlu0 0
        %1266 = vperm.xlu0 %1265, %v1232
        %v1267 = vpop.permute.xlu0 %1266
        %1270 = vset.pattern.permute.xlu0 0
        %1271 = vperm.xlu0 %1270, %v1233
        %v1272 = vpop.permute.xlu0 %1271
        %v1274 = vmul.f32 %v537, %v1237
        %v1275 = vmul.f32 %v536, %v1242
        %v1276 = vmul.f32 %v535, %v1247
        %v1277 = vmul.f32 %v534, %v1252
        %v1278 = vmul.f32 %v533, %v1257
        %v1279 = vmul.f32 %v532, %v1262
        %v1280 = vmul.f32 %v531, %v1267
        %v1281 = vmul.f32 %v538, %v1272
        %v1282 = vpack.c.bf16 %v1275, %v1274
        %v1283 = vpack.c.bf16 %v1277, %v1276
        %v1284 = vpack.c.bf16 %v1279, %v1278
        %v1285 = vpack.c.bf16 %v1281, %v1280
        %s1286 = scalar_lea.vmem %s2, 80
        %v1287 = vld [vmem:[%s1286] sm:$0xf]
        %v1288 = vld [vmem:[%s1286 + $0x4] sm:$0xf]
        %v1289 = vld [vmem:[%s1286 + $0x8] sm:$0xf]
        %v1290 = vld [vmem:[%s1286 + $0xc] sm:$0xf]
        %v1295 = vunpack.c.l.b16 %v1287
        %v1296 = vunpack.c.l.b16 %v1288
        %v1297 = vunpack.c.l.b16 %v1289
        %v1298 = vunpack.c.l.b16 %v1290
        %v1299 = vpack.c.b16 %v1296, %v1295
        %v1300 = vpack.c.b16 %v1298, %v1297
        %v1304 = vsel %vm434, %v1282, 0
        %v1307 = vsel %vm434, %v1283, 0
        %v1310 = vsel %vm434, %v1284, 0
        %v1313 = vsel %vm434, %v1285, 0
        %1315 = vmatprep.subr.bf16.mxu0 0
        %1316 = vmatpush1.bf16.msra.mxu0 %v1299
        %1317 = vmatprep.subr.bf16.mxu0 0
        %1318 = vmatpush1.bf16.msra.mxu0 %v1300
        %1319 = vmatprep.subr.bf16.mxu0 0
        %1320 = vmatpush1.bf16.msra.mxu0 0
        %1321 = vmatprep.subr.bf16.mxu0 0
        %1322 = vmatpush1.bf16.msra.mxu0 0
        %1323 = vmatprep.subr.bf16.mxu0 0
        %1324 = vmatpush1.bf16.msra.mxu0 0
        %1325 = vmatprep.subr.bf16.mxu0 0
        %1326 = vmatpush1.bf16.msra.mxu0 0
        %1327 = vmatprep.subr.bf16.mxu0 0
        %1328 = vmatpush1.bf16.msra.mxu0 0
        %1329 = vmatprep.subr.bf16.mxu0 0
        %1330 = vmatpush1.bf16.msra.mxu0 0
        %1331 = vmatprep.subr.bf16.mxu0 0
        %1332 = vmatpush1.bf16.msra.mxu0 0
        %1333 = vmatprep.subr.bf16.mxu0 0
        %1334 = vmatpush1.bf16.msra.mxu0 0
        %1335 = vmatprep.subr.bf16.mxu0 0
        %1336 = vmatpush1.bf16.msra.mxu0 0
        %1337 = vmatprep.subr.bf16.mxu0 0
        %1338 = vmatpush1.bf16.msra.mxu0 0
        %1339 = vmatprep.subr.bf16.mxu0 0
        %1340 = vmatpush1.bf16.msra.mxu0 0
        %1341 = vmatprep.subr.bf16.mxu0 0
        %1342 = vmatpush1.bf16.msra.mxu0 0
        %1343 = vmatprep.subr.bf16.mxu0 0
        %1344 = vmatpush1.bf16.msra.mxu0 0
        %1345 = vmatprep.subr.bf16.mxu0 0
        %1346 = vmatpush1.bf16.msra.mxu0 0
        %1347 = vmatprep.mubr.bf16.mxu0 0
        %1348 = vmatmul.mubr.bf16.gmra.mrb[0].mxu0 %v1304
        %v1349 = vpop.f32.mrb[0].mxu0
        %v1350 = vadd.f32 0.0, %v1349
        %v1351 = vpop.f32.mrb[0].mxu0
        %v1352 = vpop.f32.mrb[0].mxu0
        %v1353 = vadd.f32 0.0, %v1352
        %v1354 = vpop.f32.mrb[0].mxu0
        %1355 = vmatprep.mubr.bf16.mxu0 0
        %1356 = vmatmul.mubr.bf16.gmra.mrb[0].mxu0 %v1307
        %v1357 = vpop.f32.mrb[0].mxu0
        %v1358 = vadd.f32 0.0, %v1357
        %v1359 = vpop.f32.mrb[0].mxu0
        %v1360 = vpop.f32.mrb[0].mxu0
        %v1361 = vadd.f32 0.0, %v1360
        %v1362 = vpop.f32.mrb[0].mxu0
        %1363 = vmatprep.mubr.bf16.mxu0 0
        %1364 = vmatmul.mubr.bf16.gmra.mrb[0].mxu0 %v1310
        %v1365 = vpop.f32.mrb[0].mxu0
        %v1366 = vadd.f32 0.0, %v1365
        %v1367 = vpop.f32.mrb[0].mxu0
        %v1368 = vpop.f32.mrb[0].mxu0
        %v1369 = vadd.f32 0.0, %v1368
        %v1370 = vpop.f32.mrb[0].mxu0
        %1371 = vmatprep.mubr.bf16.mxu0 0
        %1372 = vmatmul.mubr.bf16.gmra.mrb[0].mxu0 %v1313
        %v1373 = vpop.f32.mrb[0].mxu0
        %v1374 = vadd.f32 0.0, %v1373
        %v1375 = vpop.f32.mrb[0].mxu0
        %v1376 = vpop.f32.mrb[0].mxu0
        %v1377 = vadd.f32 0.0, %v1376
        %v1378 = vpop.f32.mrb[0].mxu0
        %1379 = vdwg.mxu0
        %v1380 = vadd.f32 %v1217, %v1350
        %v1381 = vadd.f32 %v1218, %v1353
        %v1382 = vadd.f32 %v1219, %v1358
        %v1383 = vadd.f32 %v1220, %v1361
        %v1384 = vadd.f32 %v1221, %v1366
        %v1385 = vadd.f32 %v1222, %v1369
        %v1386 = vadd.f32 %v1223, %v1374
        %v1387 = vadd.f32 %v1224, %v1377
        %v1388 = vrot.slane %v350, 6
        %v1389 = vrot.slane %v351, 6
        %v1390 = vrot.slane %v352, 6
        %v1391 = vrot.slane %v353, 6
        %v1392 = vrot.slane %v354, 6
        %v1393 = vrot.slane %v355, 6
        %v1394 = vrot.slane %v356, 6
        %v1395 = vrot.slane %v357, 6
        %vm1396 = vcmp.lt.s32.totalorder %v529, 2
        %v1397 = vsel %vm1396, %v1394, %v1395
        %v1398 = vsel %vm1396, %v1393, %v1394
        %v1399 = vsel %vm1396, %v1392, %v1393
        %v1400 = vsel %vm1396, %v1391, %v1392
        %v1401 = vsel %vm1396, %v1390, %v1391
        %v1402 = vsel %vm1396, %v1389, %v1390
        %v1403 = vsel %vm1396, %v1388, %v1389
        %v1404 = vsel %vm1396, %v1395, %v1388
        %s1405 = scalar_lea.vmem %s1, 384
        %v1406 = vld [vmem:[%s1405] sm:$0xff]
        %v1407 = vld [vmem:[%s1405 + $0x8] sm:$0xff]
        %v1408 = vld [vmem:[%s1405 + $0x10] sm:$0xff]
        %v1409 = vld [vmem:[%s1405 + $0x18] sm:$0xff]
        %v1410 = vld [vmem:[%s1405 + $0x20] sm:$0xff]
        %v1411 = vld [vmem:[%s1405 + $0x28] sm:$0xff]
        %v1412 = vld [vmem:[%s1405 + $0x30] sm:$0xff]
        %v1413 = vld [vmem:[%s1405 + $0x38] sm:$0xff]
        %1415 = vset.pattern.permute.xlu0 0
        %1416 = vperm.xlu0 %1415, %v1406
        %v1417 = vpop.permute.xlu0 %1416
        %1420 = vset.pattern.permute.xlu0 0
        %1421 = vperm.xlu0 %1420, %v1407
        %v1422 = vpop.permute.xlu0 %1421
        %1425 = vset.pattern.permute.xlu0 0
        %1426 = vperm.xlu0 %1425, %v1408
        %v1427 = vpop.permute.xlu0 %1426
        %1430 = vset.pattern.permute.xlu0 0
        %1431 = vperm.xlu0 %1430, %v1409
        %v1432 = vpop.permute.xlu0 %1431
        %1435 = vset.pattern.permute.xlu0 0
        %1436 = vperm.xlu0 %1435, %v1410
        %v1437 = vpop.permute.xlu0 %1436
        %1440 = vset.pattern.permute.xlu0 0
        %1441 = vperm.xlu0 %1440, %v1411
        %v1442 = vpop.permute.xlu0 %1441
        %1445 = vset.pattern.permute.xlu0 0
        %1446 = vperm.xlu0 %1445, %v1412
        %v1447 = vpop.permute.xlu0 %1446
        %1450 = vset.pattern.permute.xlu0 0
        %1451 = vperm.xlu0 %1450, %v1413
        %v1452 = vpop.permute.xlu0 %1451
        %v1454 = vmul.f32 %v1403, %v1417
        %v1455 = vmul.f32 %v1402, %v1422
        %v1456 = vmul.f32 %v1401, %v1427
        %v1457 = vmul.f32 %v1400, %v1432
        %v1458 = vmul.f32 %v1399, %v1437
        %v1459 = vmul.f32 %v1398, %v1442
        %v1460 = vmul.f32 %v1397, %v1447
        %v1461 = vmul.f32 %v1404, %v1452
        %v1462 = vpack.c.bf16 %v1455, %v1454
        %v1463 = vpack.c.bf16 %v1457, %v1456
        %v1464 = vpack.c.bf16 %v1459, %v1458
        %v1465 = vpack.c.bf16 %v1461, %v1460
        %s1466 = scalar_lea.vmem %s2, 96
        %v1467 = vld [vmem:[%s1466] sm:$0xf]
        %v1468 = vld [vmem:[%s1466 + $0x4] sm:$0xf]
        %v1469 = vld [vmem:[%s1466 + $0x8] sm:$0xf]
        %v1470 = vld [vmem:[%s1466 + $0xc] sm:$0xf]
        %v1475 = vunpack.c.l.b16 %v1467
        %v1476 = vunpack.c.l.b16 %v1468
        %v1477 = vunpack.c.l.b16 %v1469
        %v1478 = vunpack.c.l.b16 %v1470
        %v1479 = vpack.c.b16 %v1476, %v1475
        %v1480 = vpack.c.b16 %v1478, %v1477
        %v1484 = vsel %vm434, %v1462, 0
        %v1487 = vsel %vm434, %v1463, 0
        %v1490 = vsel %vm434, %v1464, 0
        %v1493 = vsel %vm434, %v1465, 0
        %1495 = vmatprep.subr.bf16.mxu0 0
        %1496 = vmatpush1.bf16.msra.mxu0 %v1479
        %1497 = vmatprep.subr.bf16.mxu0 0
        %1498 = vmatpush1.bf16.msra.mxu0 %v1480
        %1499 = vmatprep.subr.bf16.mxu0 0
        %1500 = vmatpush1.bf16.msra.mxu0 0
        %1501 = vmatprep.subr.bf16.mxu0 0
        %1502 = vmatpush1.bf16.msra.mxu0 0
        %1503 = vmatprep.subr.bf16.mxu0 0
        %1504 = vmatpush1.bf16.msra.mxu0 0
        %1505 = vmatprep.subr.bf16.mxu0 0
        %1506 = vmatpush1.bf16.msra.mxu0 0
        %1507 = vmatprep.subr.bf16.mxu0 0
        %1508 = vmatpush1.bf16.msra.mxu0 0
        %1509 = vmatprep.subr.bf16.mxu0 0
        %1510 = vmatpush1.bf16.msra.mxu0 0
        %1511 = vmatprep.subr.bf16.mxu0 0
        %1512 = vmatpush1.bf16.msra.mxu0 0
        %1513 = vmatprep.subr.bf16.mxu0 0
        %1514 = vmatpush1.bf16.msra.mxu0 0
        %1515 = vmatprep.subr.bf16.mxu0 0
        %1516 = vmatpush1.bf16.msra.mxu0 0
        %1517 = vmatprep.subr.bf16.mxu0 0
        %1518 = vmatpush1.bf16.msra.mxu0 0
        %1519 = vmatprep.subr.bf16.mxu0 0
        %1520 = vmatpush1.bf16.msra.mxu0 0
        %1521 = vmatprep.subr.bf16.mxu0 0
        %1522 = vmatpush1.bf16.msra.mxu0 0
        %1523 = vmatprep.subr.bf16.mxu0 0
        %1524 = vmatpush1.bf16.msra.mxu0 0
        %1525 = vmatprep.subr.bf16.mxu0 0
        %1526 = vmatpush1.bf16.msra.mxu0 0
        %1527 = vmatprep.mubr.bf16.mxu0 0
        %1528 = vmatmul.mubr.bf16.gmra.mrb[0].mxu0 %v1484
        %v1529 = vpop.f32.mrb[0].mxu0
        %v1530 = vadd.f32 0.0, %v1529
        %v1531 = vpop.f32.mrb[0].mxu0
        %v1532 = vpop.f32.mrb[0].mxu0
        %v1533 = vadd.f32 0.0, %v1532
        %v1534 = vpop.f32.mrb[0].mxu0
        %1535 = vmatprep.mubr.bf16.mxu0 0
        %1536 = vmatmul.mubr.bf16.gmra.mrb[0].mxu0 %v1487
        %v1537 = vpop.f32.mrb[0].mxu0
        %v1538 = vadd.f32 0.0, %v1537
        %v1539 = vpop.f32.mrb[0].mxu0
        %v1540 = vpop.f32.mrb[0].mxu0
        %v1541 = vadd.f32 0.0, %v1540
        %v1542 = vpop.f32.mrb[0].mxu0
        %1543 = vmatprep.mubr.bf16.mxu0 0
        %1544 = vmatmul.mubr.bf16.gmra.mrb[0].mxu0 %v1490
        %v1545 = vpop.f32.mrb[0].mxu0
        %v1546 = vadd.f32 0.0, %v1545
        %v1547 = vpop.f32.mrb[0].mxu0
        %v1548 = vpop.f32.mrb[0].mxu0
        %v1549 = vadd.f32 0.0, %v1548
        %v1550 = vpop.f32.mrb[0].mxu0
        %1551 = vmatprep.mubr.bf16.mxu0 0
        %1552 = vmatmul.mubr.bf16.gmra.mrb[0].mxu0 %v1493
        %v1553 = vpop.f32.mrb[0].mxu0
        %v1554 = vadd.f32 0.0, %v1553
        %v1555 = vpop.f32.mrb[0].mxu0
        %v1556 = vpop.f32.mrb[0].mxu0
        %v1557 = vadd.f32 0.0, %v1556
        %v1558 = vpop.f32.mrb[0].mxu0
        %1559 = vdwg.mxu0
        %v1560 = vadd.f32 %v1380, %v1530
        %v1561 = vadd.f32 %v1381, %v1533
        %v1562 = vadd.f32 %v1382, %v1538
        %v1563 = vadd.f32 %v1383, %v1541
        %v1564 = vadd.f32 %v1384, %v1546
        %v1565 = vadd.f32 %v1385, %v1549
        %v1566 = vadd.f32 %v1386, %v1554
        %v1567 = vadd.f32 %v1387, %v1557
        %s1568 = scalar_lea.vmem %s1, 448
        %v1569 = vld [vmem:[%s1568] sm:$0xff]
        %v1570 = vld [vmem:[%s1568 + $0x8] sm:$0xff]
        %v1571 = vld [vmem:[%s1568 + $0x10] sm:$0xff]
        %v1572 = vld [vmem:[%s1568 + $0x18] sm:$0xff]
        %v1573 = vld [vmem:[%s1568 + $0x20] sm:$0xff]
        %v1574 = vld [vmem:[%s1568 + $0x28] sm:$0xff]
        %v1575 = vld [vmem:[%s1568 + $0x30] sm:$0xff]
        %v1576 = vld [vmem:[%s1568 + $0x38] sm:$0xff]
        %1578 = vset.pattern.permute.xlu0 0
        %1579 = vperm.xlu0 %1578, %v1569
        %v1580 = vpop.permute.xlu0 %1579
        %1583 = vset.pattern.permute.xlu0 0
        %1584 = vperm.xlu0 %1583, %v1570
        %v1585 = vpop.permute.xlu0 %1584
        %1588 = vset.pattern.permute.xlu0 0
        %1589 = vperm.xlu0 %1588, %v1571
        %v1590 = vpop.permute.xlu0 %1589
        %1593 = vset.pattern.permute.xlu0 0
        %1594 = vperm.xlu0 %1593, %v1572
        %v1595 = vpop.permute.xlu0 %1594
        %1598 = vset.pattern.permute.xlu0 0
        %1599 = vperm.xlu0 %1598, %v1573
        %v1600 = vpop.permute.xlu0 %1599
        %1603 = vset.pattern.permute.xlu0 0
        %1604 = vperm.xlu0 %1603, %v1574
        %v1605 = vpop.permute.xlu0 %1604
        %1608 = vset.pattern.permute.xlu0 0
        %1609 = vperm.xlu0 %1608, %v1575
        %v1610 = vpop.permute.xlu0 %1609
        %1613 = vset.pattern.permute.xlu0 0
        %1614 = vperm.xlu0 %1613, %v1576
        %v1615 = vpop.permute.xlu0 %1614
        %v1617 = vmul.f32 %v897, %v1580
        %v1618 = vmul.f32 %v896, %v1585
        %v1619 = vmul.f32 %v895, %v1590
        %v1620 = vmul.f32 %v894, %v1595
        %v1621 = vmul.f32 %v893, %v1600
        %v1622 = vmul.f32 %v892, %v1605
        %v1623 = vmul.f32 %v891, %v1610
        %v1624 = vmul.f32 %v898, %v1615
        %v1625 = vpack.c.bf16 %v1618, %v1617
        %v1626 = vpack.c.bf16 %v1620, %v1619
        %v1627 = vpack.c.bf16 %v1622, %v1621
        %v1628 = vpack.c.bf16 %v1624, %v1623
        %s1629 = scalar_lea.vmem %s2, 112
        %v1630 = vld [vmem:[%s1629] sm:$0xf]
        %v1631 = vld [vmem:[%s1629 + $0x4] sm:$0xf]
        %v1632 = vld [vmem:[%s1629 + $0x8] sm:$0xf]
        %v1633 = vld [vmem:[%s1629 + $0xc] sm:$0xf]
        %v1638 = vunpack.c.l.b16 %v1630
        %v1639 = vunpack.c.l.b16 %v1631
        %v1640 = vunpack.c.l.b16 %v1632
        %v1641 = vunpack.c.l.b16 %v1633
        %v1642 = vpack.c.b16 %v1639, %v1638
        %v1643 = vpack.c.b16 %v1641, %v1640
        %v1647 = vsel %vm434, %v1625, 0
        %v1650 = vsel %vm434, %v1626, 0
        %v1653 = vsel %vm434, %v1627, 0
        %v1656 = vsel %vm434, %v1628, 0
        %1658 = vmatprep.subr.bf16.mxu0 0
        %1659 = vmatpush1.bf16.msra.mxu0 %v1642
        %1660 = vmatprep.subr.bf16.mxu0 0
        %1661 = vmatpush1.bf16.msra.mxu0 %v1643
        %1662 = vmatprep.subr.bf16.mxu0 0
        %1663 = vmatpush1.bf16.msra.mxu0 0
        %1664 = vmatprep.subr.bf16.mxu0 0
        %1665 = vmatpush1.bf16.msra.mxu0 0
        %1666 = vmatprep.subr.bf16.mxu0 0
        %1667 = vmatpush1.bf16.msra.mxu0 0
        %1668 = vmatprep.subr.bf16.mxu0 0
        %1669 = vmatpush1.bf16.msra.mxu0 0
        %1670 = vmatprep.subr.bf16.mxu0 0
        %1671 = vmatpush1.bf16.msra.mxu0 0
        %1672 = vmatprep.subr.bf16.mxu0 0
        %1673 = vmatpush1.bf16.msra.mxu0 0
        %1674 = vmatprep.subr.bf16.mxu0 0
        %1675 = vmatpush1.bf16.msra.mxu0 0
        %1676 = vmatprep.subr.bf16.mxu0 0
        %1677 = vmatpush1.bf16.msra.mxu0 0
        %1678 = vmatprep.subr.bf16.mxu0 0
        %1679 = vmatpush1.bf16.msra.mxu0 0
        %1680 = vmatprep.subr.bf16.mxu0 0
        %1681 = vmatpush1.bf16.msra.mxu0 0
        %1682 = vmatprep.subr.bf16.mxu0 0
        %1683 = vmatpush1.bf16.msra.mxu0 0
        %1684 = vmatprep.subr.bf16.mxu0 0
        %1685 = vmatpush1.bf16.msra.mxu0 0
        %1686 = vmatprep.subr.bf16.mxu0 0
        %1687 = vmatpush1.bf16.msra.mxu0 0
        %1688 = vmatprep.subr.bf16.mxu0 0
        %1689 = vmatpush1.bf16.msra.mxu0 0
        %1690 = vmatprep.mubr.bf16.mxu0 0
        %1691 = vmatmul.mubr.bf16.gmra.mrb[0].mxu0 %v1647
        %v1692 = vpop.f32.mrb[0].mxu0
        %v1693 = vadd.f32 0.0, %v1692
        %v1694 = vpop.f32.mrb[0].mxu0
        %v1695 = vpop.f32.mrb[0].mxu0
        %v1696 = vadd.f32 0.0, %v1695
        %v1697 = vpop.f32.mrb[0].mxu0
        %1698 = vmatprep.mubr.bf16.mxu0 0
        %1699 = vmatmul.mubr.bf16.gmra.mrb[0].mxu0 %v1650
        %v1700 = vpop.f32.mrb[0].mxu0
        %v1701 = vadd.f32 0.0, %v1700
        %v1702 = vpop.f32.mrb[0].mxu0
        %v1703 = vpop.f32.mrb[0].mxu0
        %v1704 = vadd.f32 0.0, %v1703
        %v1705 = vpop.f32.mrb[0].mxu0
        %1706 = vmatprep.mubr.bf16.mxu0 0
        %1707 = vmatmul.mubr.bf16.gmra.mrb[0].mxu0 %v1653
        %v1708 = vpop.f32.mrb[0].mxu0
        %v1709 = vadd.f32 0.0, %v1708
        %v1710 = vpop.f32.mrb[0].mxu0
        %v1711 = vpop.f32.mrb[0].mxu0
        %v1712 = vadd.f32 0.0, %v1711
        %v1713 = vpop.f32.mrb[0].mxu0
        %1714 = vmatprep.mubr.bf16.mxu0 0
        %1715 = vmatmul.mubr.bf16.gmra.mrb[0].mxu0 %v1656
        %v1716 = vpop.f32.mrb[0].mxu0
        %v1717 = vadd.f32 0.0, %v1716
        %v1718 = vpop.f32.mrb[0].mxu0
        %v1719 = vpop.f32.mrb[0].mxu0
        %v1720 = vadd.f32 0.0, %v1719
        %v1721 = vpop.f32.mrb[0].mxu0
        %1722 = vdwg.mxu0
        %v1723 = vadd.f32 %v1560, %v1693
        %v1724 = vadd.f32 %v1561, %v1696
        %v1725 = vadd.f32 %v1562, %v1701
        %v1726 = vadd.f32 %v1563, %v1704
        %v1727 = vadd.f32 %v1564, %v1709
        %v1728 = vadd.f32 %v1565, %v1712
        %v1729 = vadd.f32 %v1566, %v1717
        %v1730 = vadd.f32 %v1567, %v1720
        %s1731 = scalar_lea.vmem %s1, 512
        %v1732 = vld [vmem:[%s1731] sm:$0xff]
        %v1733 = vld [vmem:[%s1731 + $0x8] sm:$0xff]
        %v1734 = vld [vmem:[%s1731 + $0x10] sm:$0xff]
        %v1735 = vld [vmem:[%s1731 + $0x18] sm:$0xff]
        %v1736 = vld [vmem:[%s1731 + $0x20] sm:$0xff]
        %v1737 = vld [vmem:[%s1731 + $0x28] sm:$0xff]
        %v1738 = vld [vmem:[%s1731 + $0x30] sm:$0xff]
        %v1739 = vld [vmem:[%s1731 + $0x38] sm:$0xff]
        %1741 = vset.pattern.permute.xlu0 0
        %1742 = vperm.xlu0 %1741, %v1732
        %v1743 = vpop.permute.xlu0 %1742
        %1746 = vset.pattern.permute.xlu0 0
        %1747 = vperm.xlu0 %1746, %v1733
        %v1748 = vpop.permute.xlu0 %1747
        %1751 = vset.pattern.permute.xlu0 0
        %1752 = vperm.xlu0 %1751, %v1734
        %v1753 = vpop.permute.xlu0 %1752
        %1756 = vset.pattern.permute.xlu0 0
        %1757 = vperm.xlu0 %1756, %v1735
        %v1758 = vpop.permute.xlu0 %1757
        %1761 = vset.pattern.permute.xlu0 0
        %1762 = vperm.xlu0 %1761, %v1736
        %v1763 = vpop.permute.xlu0 %1762
        %1766 = vset.pattern.permute.xlu0 0
        %1767 = vperm.xlu0 %1766, %v1737
        %v1768 = vpop.permute.xlu0 %1767
        %1771 = vset.pattern.permute.xlu0 0
        %1772 = vperm.xlu0 %1771, %v1738
        %v1773 = vpop.permute.xlu0 %1772
        %1776 = vset.pattern.permute.xlu0 0
        %1777 = vperm.xlu0 %1776, %v1739
        %v1778 = vpop.permute.xlu0 %1777
        %v1780 = vmul.f32 %v351, %v1743
        %v1781 = vmul.f32 %v352, %v1748
        %v1782 = vmul.f32 %v353, %v1753
        %v1783 = vmul.f32 %v354, %v1758
        %v1784 = vmul.f32 %v355, %v1763
        %v1785 = vmul.f32 %v356, %v1768
        %v1786 = vmul.f32 %v357, %v1773
        %v1787 = vmul.f32 %v350, %v1778
        %v1788 = vpack.c.bf16 %v1781, %v1780
        %v1789 = vpack.c.bf16 %v1783, %v1782
        %v1790 = vpack.c.bf16 %v1785, %v1784
        %v1791 = vpack.c.bf16 %v1787, %v1786
        %s1792 = scalar_lea.vmem %s2, 128
        %v1793 = vld [vmem:[%s1792] sm:$0xf]
        %v1794 = vld [vmem:[%s1792 + $0x4] sm:$0xf]
        %v1795 = vld [vmem:[%s1792 + $0x8] sm:$0xf]
        %v1796 = vld [vmem:[%s1792 + $0xc] sm:$0xf]
        %v1801 = vunpack.c.l.b16 %v1793
        %v1802 = vunpack.c.l.b16 %v1794
        %v1803 = vunpack.c.l.b16 %v1795
        %v1804 = vunpack.c.l.b16 %v1796
        %v1805 = vpack.c.b16 %v1802, %v1801
        %v1806 = vpack.c.b16 %v1804, %v1803
        %v1810 = vsel %vm434, %v1788, 0
        %v1813 = vsel %vm434, %v1789, 0
        %v1816 = vsel %vm434, %v1790, 0
        %v1819 = vsel %vm434, %v1791, 0
        %1821 = vmatprep.subr.bf16.mxu0 0
        %1822 = vmatpush1.bf16.msra.mxu0 %v1805
        %1823 = vmatprep.subr.bf16.mxu0 0
        %1824 = vmatpush1.bf16.msra.mxu0 %v1806
        %1825 = vmatprep.subr.bf16.mxu0 0
        %1826 = vmatpush1.bf16.msra.mxu0 0
        %1827 = vmatprep.subr.bf16.mxu0 0
        %1828 = vmatpush1.bf16.msra.mxu0 0
        %1829 = vmatprep.subr.bf16.mxu0 0
        %1830 = vmatpush1.bf16.msra.mxu0 0
        %1831 = vmatprep.subr.bf16.mxu0 0
        %1832 = vmatpush1.bf16.msra.mxu0 0
        %1833 = vmatprep.subr.bf16.mxu0 0
        %1834 = vmatpush1.bf16.msra.mxu0 0
        %1835 = vmatprep.subr.bf16.mxu0 0
        %1836 = vmatpush1.bf16.msra.mxu0 0
        %1837 = vmatprep.subr.bf16.mxu0 0
        %1838 = vmatpush1.bf16.msra.mxu0 0
        %1839 = vmatprep.subr.bf16.mxu0 0
        %1840 = vmatpush1.bf16.msra.mxu0 0
        %1841 = vmatprep.subr.bf16.mxu0 0
        %1842 = vmatpush1.bf16.msra.mxu0 0
        %1843 = vmatprep.subr.bf16.mxu0 0
        %1844 = vmatpush1.bf16.msra.mxu0 0
        %1845 = vmatprep.subr.bf16.mxu0 0
        %1846 = vmatpush1.bf16.msra.mxu0 0
        %1847 = vmatprep.subr.bf16.mxu0 0
        %1848 = vmatpush1.bf16.msra.mxu0 0
        %1849 = vmatprep.subr.bf16.mxu0 0
        %1850 = vmatpush1.bf16.msra.mxu0 0
        %1851 = vmatprep.subr.bf16.mxu0 0
        %1852 = vmatpush1.bf16.msra.mxu0 0
        %1853 = vmatprep.mubr.bf16.mxu0 0
        %1854 = vmatmul.mubr.bf16.gmra.mrb[0].mxu0 %v1810
        %v1855 = vpop.f32.mrb[0].mxu0
        %v1856 = vadd.f32 0.0, %v1855
        %v1857 = vpop.f32.mrb[0].mxu0
        %v1858 = vpop.f32.mrb[0].mxu0
        %v1859 = vadd.f32 0.0, %v1858
        %v1860 = vpop.f32.mrb[0].mxu0
        %1861 = vmatprep.mubr.bf16.mxu0 0
        %1862 = vmatmul.mubr.bf16.gmra.mrb[0].mxu0 %v1813
        %v1863 = vpop.f32.mrb[0].mxu0
        %v1864 = vadd.f32 0.0, %v1863
        %v1865 = vpop.f32.mrb[0].mxu0
        %v1866 = vpop.f32.mrb[0].mxu0
        %v1867 = vadd.f32 0.0, %v1866
        %v1868 = vpop.f32.mrb[0].mxu0
        %1869 = vmatprep.mubr.bf16.mxu0 0
        %1870 = vmatmul.mubr.bf16.gmra.mrb[0].mxu0 %v1816
        %v1871 = vpop.f32.mrb[0].mxu0
        %v1872 = vadd.f32 0.0, %v1871
        %v1873 = vpop.f32.mrb[0].mxu0
        %v1874 = vpop.f32.mrb[0].mxu0
        %v1875 = vadd.f32 0.0, %v1874
        %v1876 = vpop.f32.mrb[0].mxu0
        %1877 = vmatprep.mubr.bf16.mxu0 0
        %1878 = vmatmul.mubr.bf16.gmra.mrb[0].mxu0 %v1819
        %v1879 = vpop.f32.mrb[0].mxu0
        %v1880 = vadd.f32 0.0, %v1879
        %v1881 = vpop.f32.mrb[0].mxu0
        %v1882 = vpop.f32.mrb[0].mxu0
        %v1883 = vadd.f32 0.0, %v1882
        %v1884 = vpop.f32.mrb[0].mxu0
        %1885 = vdwg.mxu0
        %v1886 = vadd.f32 %v1723, %v1856
        %v1887 = vadd.f32 %v1724, %v1859
        %v1888 = vadd.f32 %v1725, %v1864
        %v1889 = vadd.f32 %v1726, %v1867
        %v1890 = vadd.f32 %v1727, %v1872
        %v1891 = vadd.f32 %v1728, %v1875
        %v1892 = vadd.f32 %v1729, %v1880
        %v1893 = vadd.f32 %v1730, %v1883
        %v1894 = vxor.u32 %v1886, 2147483648
        %v1895 = vxor.u32 %v1887, 2147483648
        %v1896 = vxor.u32 %v1888, 2147483648
        %v1897 = vxor.u32 %v1889, 2147483648
        %v1898 = vxor.u32 %v1890, 2147483648
        %v1899 = vxor.u32 %v1891, 2147483648
        %v1900 = vxor.u32 %v1892, 2147483648
        %v1901 = vxor.u32 %v1893, 2147483648
        %v1902 = vmul.f32 %v1894, 1.442695
        %v1903 = vpow.pop %v1902
        %v1904 = vmul.f32 %v1895, 1.442695
        %v1905 = vpow.pop %v1904
        %v1906 = vmul.f32 %v1896, 1.442695
        %v1907 = vpow.pop %v1906
        %v1908 = vmul.f32 %v1897, 1.442695
        %v1909 = vpow.pop %v1908
        %v1910 = vmul.f32 %v1898, 1.442695
        %v1911 = vpow.pop %v1910
        %v1912 = vmul.f32 %v1899, 1.442695
        %v1913 = vpow.pop %v1912
        %v1914 = vmul.f32 %v1900, 1.442695
        %v1915 = vpow.pop %v1914
        %v1916 = vmul.f32 %v1901, 1.442695
        %v1917 = vpow.pop %v1916
        %v1918 = vadd.f32 %v1903, 1.0
        %v1919 = vadd.f32 %v1905, 1.0
        %v1920 = vadd.f32 %v1907, 1.0
        %v1921 = vadd.f32 %v1909, 1.0
        %v1922 = vadd.f32 %v1911, 1.0
        %v1923 = vadd.f32 %v1913, 1.0
        %v1924 = vadd.f32 %v1915, 1.0
        %v1925 = vadd.f32 %v1917, 1.0
        %v1926 = vrcp.pop %v1918
        %v1927 = vmul.f32 1.0, %v1926
        %v1928 = vrcp.pop %v1919
        %v1929 = vmul.f32 1.0, %v1928
        %v1930 = vrcp.pop %v1920
        %v1931 = vmul.f32 1.0, %v1930
        %v1932 = vrcp.pop %v1921
        %v1933 = vmul.f32 1.0, %v1932
        %v1934 = vrcp.pop %v1922
        %v1935 = vmul.f32 1.0, %v1934
        %v1936 = vrcp.pop %v1923
        %v1937 = vmul.f32 1.0, %v1936
        %v1938 = vrcp.pop %v1924
        %v1939 = vmul.f32 1.0, %v1938
        %v1940 = vrcp.pop %v1925
        %v1941 = vmul.f32 1.0, %v1940
        %v1942 = vtanh.pop %v1886
        %v1943 = vtanh.pop %v1887
        %v1944 = vtanh.pop %v1888
        %v1945 = vtanh.pop %v1889
        %v1946 = vtanh.pop %v1890
        %v1947 = vtanh.pop %v1891
        %v1948 = vtanh.pop %v1892
        %v1949 = vtanh.pop %v1893
        %1958 = vrot.lane.b32.xlu0 %v1927, 64
        %v1959 = vpop.permute.xlu0 %1958
        %1960 = vrot.lane.b32.xlu0 %v1929, 64
        %v1961 = vpop.permute.xlu0 %1960
        %1962 = vrot.lane.b32.xlu0 %v1931, 64
        %v1963 = vpop.permute.xlu0 %1962
        %1964 = vrot.lane.b32.xlu0 %v1933, 64
        %v1965 = vpop.permute.xlu0 %1964
        %1966 = vrot.lane.b32.xlu0 %v1935, 64
        %v1967 = vpop.permute.xlu0 %1966
        %1968 = vrot.lane.b32.xlu0 %v1937, 64
        %v1969 = vpop.permute.xlu0 %1968
        %1970 = vrot.lane.b32.xlu0 %v1939, 64
        %v1971 = vpop.permute.xlu0 %1970
        %1972 = vrot.lane.b32.xlu0 %v1941, 64
        %v1973 = vpop.permute.xlu0 %1972
        %v1982 = vmul.f32 %v1942, %v1959
        %v1983 = vmul.f32 %v1943, %v1961
        %v1984 = vmul.f32 %v1944, %v1963
        %v1985 = vmul.f32 %v1945, %v1965
        %v1986 = vmul.f32 %v1946, %v1967
        %v1987 = vmul.f32 %v1947, %v1969
        %v1988 = vmul.f32 %v1948, %v1971
        %v1989 = vmul.f32 %v1949, %v1973
        %v1990 = vld [vmem:[#allocation3] sm:$0xff]
        %v1991 = vld [vmem:[#allocation3 + $0x8] sm:$0xff]
        %v1992 = vld [vmem:[#allocation3 + $0x10] sm:$0xff]
        %v1993 = vld [vmem:[#allocation3 + $0x18] sm:$0xff]
        %v1994 = vld [vmem:[#allocation3 + $0x20] sm:$0xff]
        %v1995 = vld [vmem:[#allocation3 + $0x28] sm:$0xff]
        %v1996 = vld [vmem:[#allocation3 + $0x30] sm:$0xff]
        %v1997 = vld [vmem:[#allocation3 + $0x38] sm:$0xff]
        %1998 = vrot.lane.b32.xlu0 %v1927, 96
        %v1999 = vpop.permute.xlu0 %1998
        %2000 = vrot.lane.b32.xlu0 %v1929, 96
        %v2001 = vpop.permute.xlu0 %2000
        %2002 = vrot.lane.b32.xlu0 %v1931, 96
        %v2003 = vpop.permute.xlu0 %2002
        %2004 = vrot.lane.b32.xlu0 %v1933, 96
        %v2005 = vpop.permute.xlu0 %2004
        %2006 = vrot.lane.b32.xlu0 %v1935, 96
        %v2007 = vpop.permute.xlu0 %2006
        %2008 = vrot.lane.b32.xlu0 %v1937, 96
        %v2009 = vpop.permute.xlu0 %2008
        %2010 = vrot.lane.b32.xlu0 %v1939, 96
        %v2011 = vpop.permute.xlu0 %2010
        %2012 = vrot.lane.b32.xlu0 %v1941, 96
        %v2013 = vpop.permute.xlu0 %2012
        %v2022 = vmul.f32 %v1990, %v1999
        %v2023 = vmul.f32 %v1991, %v2001
        %v2024 = vmul.f32 %v1992, %v2003
        %v2025 = vmul.f32 %v1993, %v2005
        %v2026 = vmul.f32 %v1994, %v2007
        %v2027 = vmul.f32 %v1995, %v2009
        %v2028 = vmul.f32 %v1996, %v2011
        %v2029 = vmul.f32 %v1997, %v2013
        %2038 = vrot.lane.b32.xlu0 %v2022, 64
        %v2039 = vpop.permute.xlu0 %2038
        %2040 = vrot.lane.b32.xlu0 %v2023, 64
        %v2041 = vpop.permute.xlu0 %2040
        %2042 = vrot.lane.b32.xlu0 %v2024, 64
        %v2043 = vpop.permute.xlu0 %2042
        %2044 = vrot.lane.b32.xlu0 %v2025, 64
        %v2045 = vpop.permute.xlu0 %2044
        %2046 = vrot.lane.b32.xlu0 %v2026, 64
        %v2047 = vpop.permute.xlu0 %2046
        %2048 = vrot.lane.b32.xlu0 %v2027, 64
        %v2049 = vpop.permute.xlu0 %2048
        %2050 = vrot.lane.b32.xlu0 %v2028, 64
        %v2051 = vpop.permute.xlu0 %2050
        %2052 = vrot.lane.b32.xlu0 %v2029, 64
        %v2053 = vpop.permute.xlu0 %2052
        %v2062 = vadd.f32 %v1982, %v2039
        %v2063 = vadd.f32 %v1983, %v2041
        %v2064 = vadd.f32 %v1984, %v2043
        %v2065 = vadd.f32 %v1985, %v2045
        %v2066 = vadd.f32 %v1986, %v2047
        %v2067 = vadd.f32 %v1987, %v2049
        %v2068 = vadd.f32 %v1988, %v2051
        %v2069 = vadd.f32 %v1989, %v2053
        %v2070 = vtanh.pop %v2062
        %v2071 = vtanh.pop %v2063
        %v2072 = vtanh.pop %v2064
        %v2073 = vtanh.pop %v2065
        %v2074 = vtanh.pop %v2066
        %v2075 = vtanh.pop %v2067
        %v2076 = vtanh.pop %v2068
        %v2077 = vtanh.pop %v2069
        %2086 = vrot.lane.b32.xlu0 %v2070, 32
        %v2087 = vpop.permute.xlu0 %2086
        %2088 = vrot.lane.b32.xlu0 %v2071, 32
        %v2089 = vpop.permute.xlu0 %2088
        %2090 = vrot.lane.b32.xlu0 %v2072, 32
        %v2091 = vpop.permute.xlu0 %2090
        %2092 = vrot.lane.b32.xlu0 %v2073, 32
        %v2093 = vpop.permute.xlu0 %2092
        %2094 = vrot.lane.b32.xlu0 %v2074, 32
        %v2095 = vpop.permute.xlu0 %2094
        %2096 = vrot.lane.b32.xlu0 %v2075, 32
        %v2097 = vpop.permute.xlu0 %2096
        %2098 = vrot.lane.b32.xlu0 %v2076, 32
        %v2099 = vpop.permute.xlu0 %2098
        %2100 = vrot.lane.b32.xlu0 %v2077, 32
        %v2101 = vpop.permute.xlu0 %2100
        %v2110 = vmul.f32 %v1927, %v2087
        %v2111 = vmul.f32 %v1929, %v2089
        %v2112 = vmul.f32 %v1931, %v2091
        %v2113 = vmul.f32 %v1933, %v2093
        %v2114 = vmul.f32 %v1935, %v2095
        %v2115 = vmul.f32 %v1937, %v2097
        %v2116 = vmul.f32 %v1939, %v2099
        %v2117 = vmul.f32 %v1941, %v2101
        %2126 = vrot.lane.b32.xlu0 %v2062, 64
        %v2127 = vpop.permute.xlu0 %2126
        %2128 = vrot.lane.b32.xlu0 %v2063, 64
        %v2129 = vpop.permute.xlu0 %2128
        %2130 = vrot.lane.b32.xlu0 %v2064, 64
        %v2131 = vpop.permute.xlu0 %2130
        %2132 = vrot.lane.b32.xlu0 %v2065, 64
        %v2133 = vpop.permute.xlu0 %2132
        %2134 = vrot.lane.b32.xlu0 %v2066, 64
        %v2135 = vpop.permute.xlu0 %2134
        %2136 = vrot.lane.b32.xlu0 %v2067, 64
        %v2137 = vpop.permute.xlu0 %2136
        %2138 = vrot.lane.b32.xlu0 %v2068, 64
        %v2139 = vpop.permute.xlu0 %2138
        %2140 = vrot.lane.b32.xlu0 %v2069, 64
        %v2141 = vpop.permute.xlu0 %2140
        %2150 = vst.msk [vmem:[#allocation3] sm:$0xff] %vm434, %v2127
        %2151 = vst.msk [vmem:[#allocation3 + $0x8] sm:$0xff] %vm434, %v2129
        %2152 = vst.msk [vmem:[#allocation3 + $0x10] sm:$0xff] %vm434, %v2131
        %2153 = vst.msk [vmem:[#allocation3 + $0x18] sm:$0xff] %vm434, %v2133
        %2154 = vst.msk [vmem:[#allocation3 + $0x20] sm:$0xff] %vm434, %v2135
        %2155 = vst.msk [vmem:[#allocation3 + $0x28] sm:$0xff] %vm434, %v2137
        %2156 = vst.msk [vmem:[#allocation3 + $0x30] sm:$0xff] %vm434, %v2139
        %2157 = vst.msk [vmem:[#allocation3 + $0x38] sm:$0xff] %vm434, %v2141
        %2166 = vrot.lane.b32.xlu0 %v2110, 32
        %v2167 = vpop.permute.xlu0 %2166
        %2168 = vrot.lane.b32.xlu0 %v2111, 32
        %v2169 = vpop.permute.xlu0 %2168
        %2170 = vrot.lane.b32.xlu0 %v2112, 32
        %v2171 = vpop.permute.xlu0 %2170
        %2172 = vrot.lane.b32.xlu0 %v2113, 32
        %v2173 = vpop.permute.xlu0 %2172
        %2174 = vrot.lane.b32.xlu0 %v2114, 32
        %v2175 = vpop.permute.xlu0 %2174
        %2176 = vrot.lane.b32.xlu0 %v2115, 32
        %v2177 = vpop.permute.xlu0 %2176
        %2178 = vrot.lane.b32.xlu0 %v2116, 32
        %v2179 = vpop.permute.xlu0 %2178
        %2180 = vrot.lane.b32.xlu0 %v2117, 32
        %v2181 = vpop.permute.xlu0 %2180
        %2190 = vst.msk [vmem:[#allocation2] sm:$0xff] %vm434, %v2167
        %2191 = vst.msk [vmem:[#allocation2 + $0x8] sm:$0xff] %vm434, %v2169
        %2192 = vst.msk [vmem:[#allocation2 + $0x10] sm:$0xff] %vm434, %v2171
        %2193 = vst.msk [vmem:[#allocation2 + $0x18] sm:$0xff] %vm434, %v2173
        %2194 = vst.msk [vmem:[#allocation2 + $0x20] sm:$0xff] %vm434, %v2175
        %2195 = vst.msk [vmem:[#allocation2 + $0x28] sm:$0xff] %vm434, %v2177
        %2196 = vst.msk [vmem:[#allocation2 + $0x30] sm:$0xff] %vm434, %v2179
        %2197 = vst.msk [vmem:[#allocation2 + $0x38] sm:$0xff] %vm434, %v2181
        %p2198 = scmp.eq.s32.totalorder %s30, 3
        // Predicated region
        $region49: #{tpu_custom_call.1} parent=43 // pred_check
          %p2199 = pneg %p2198
        $region50: #{tpu_custom_call.1} parent=43 // pred_check_branch
          %2201 = sbr.rel (%p2199) target = $region52
        $region51: #{tpu_custom_call.1} parent=43 // pred_region
          %v2202 = vld [vmem:[%s5] sm:$0x1]
          %vm2203 = vcmask 523264
          %v2205 = vsel %vm2203, %v2202, 0
          %2207 = vmatprep.subr.mxu0 0.0
          %2208 = vmatpush1.msra.mxu0 %v2127
          %2209 = vmatprep.subr.mxu0 0.0
          %2210 = vmatpush1.msra.mxu0 %v2129
          %2211 = vmatprep.subr.mxu0 0.0
          %2212 = vmatpush1.msra.mxu0 %v2131
          %2213 = vmatprep.subr.mxu0 0.0
          %2214 = vmatpush1.msra.mxu0 %v2133
          %2215 = vmatprep.subr.mxu0 0.0
          %2216 = vmatpush1.msra.mxu0 %v2135
          %2217 = vmatprep.subr.mxu0 0.0
          %2218 = vmatpush1.msra.mxu0 %v2137
          %2219 = vmatprep.subr.mxu0 0.0
          %2220 = vmatpush1.msra.mxu0 %v2139
          %2221 = vmatprep.subr.mxu0 0.0
          %2222 = vmatpush1.msra.mxu0 %v2141
          %2223 = vmatprep.subr.mxu0 0.0
          %2224 = vmatpush1.msra.mxu0 0.0
          %2225 = vmatprep.subr.mxu0 0.0
          %2226 = vmatpush1.msra.mxu0 0.0
          %2227 = vmatprep.subr.mxu0 0.0
          %2228 = vmatpush1.msra.mxu0 0.0
          %2229 = vmatprep.subr.mxu0 0.0
          %2230 = vmatpush1.msra.mxu0 0.0
          %2231 = vmatprep.subr.mxu0 0.0
          %2232 = vmatpush1.msra.mxu0 0.0
          %2233 = vmatprep.subr.mxu0 0.0
          %2234 = vmatpush1.msra.mxu0 0.0
          %2235 = vmatprep.subr.mxu0 0.0
          %2236 = vmatpush1.msra.mxu0 0.0
          %2237 = vmatprep.subr.mxu0 0.0
          %2238 = vmatpush1.msra.mxu0 0.0
          %2239 = vmatprep.subr.mxu0 0.0
          %2240 = vmatpush1.msra.mxu0 0.0
          %2241 = vmatprep.subr.mxu0 0.0
          %2242 = vmatpush1.msra.mxu0 0.0
          %2243 = vmatprep.subr.mxu0 0.0
          %2244 = vmatpush1.msra.mxu0 0.0
          %2245 = vmatprep.subr.mxu0 0.0
          %2246 = vmatpush1.msra.mxu0 0.0
          %2247 = vmatprep.subr.mxu0 0.0
          %2248 = vmatpush1.msra.mxu0 0.0
          %2249 = vmatprep.subr.mxu0 0.0
          %2250 = vmatpush1.msra.mxu0 0.0
          %2251 = vmatprep.subr.mxu0 0.0
          %2252 = vmatpush1.msra.mxu0 0.0
          %2253 = vmatprep.subr.mxu0 0.0
          %2254 = vmatpush1.msra.mxu0 0.0
          %2255 = vmatprep.subr.mxu0 0.0
          %2256 = vmatpush1.msra.mxu0 0.0
          %2257 = vmatprep.subr.mxu0 0.0
          %2258 = vmatpush1.msra.mxu0 0.0
          %2259 = vmatprep.subr.mxu0 0.0
          %2260 = vmatpush1.msra.mxu0 0.0
          %2261 = vmatprep.subr.mxu0 0.0
          %2262 = vmatpush1.msra.mxu0 0.0
          %2263 = vmatprep.subr.mxu0 0.0
          %2264 = vmatpush1.msra.mxu0 0.0
          %2265 = vmatprep.subr.mxu0 0.0
          %2266 = vmatpush1.msra.mxu0 0.0
          %2267 = vmatprep.subr.mxu0 0.0
          %2268 = vmatpush1.msra.mxu0 0.0
          %2269 = vmatprep.subr.mxu0 0.0
          %2270 = vmatpush1.msra.mxu0 0.0
          %2271 = vmatprep.mubr.f32.mxu0 0.0
          %2272 = vmatmul.mubr.f32.gmra.mrb[0].mxu0 %v2205
          %v2273 = vpop.f32.mrb[0].mxu0
          %v2274 = vadd.f32 0.0, %v2273
          %v2275 = vpop.f32.mrb[0].mxu0
          %2276 = vdwg.mxu0
          %vm2277 = vcmask 253952
          %2278 = vst.msk [vmem:[%s302] sm:$0x1] %vm2277, %v2274
          %v2279 = vld [vmem:[%s3] sm:$0xff]
          %v2280 = vld [vmem:[%s3 + $0x8] sm:$0xff]
          %v2281 = vld [vmem:[%s3 + $0x10] sm:$0xff]
          %v2282 = vld [vmem:[%s3 + $0x18] sm:$0xff]
          %v2283 = vld [vmem:[%s4] sm:$0x1]
          %v2285 = vsel %vm434, %v2274, 0
          %2287 = vmatprep.subr.mxu0 0.0
          %2288 = vmatpush1.msra.mxu0 %v2279
          %2289 = vmatprep.subr.mxu0 0.0
          %2290 = vmatpush1.msra.mxu0 %v2280
          %2291 = vmatprep.subr.mxu0 0.0
          %2292 = vmatpush1.msra.mxu0 %v2281
          %2293 = vmatprep.subr.mxu0 0.0
          %2294 = vmatpush1.msra.mxu0 %v2282
          %2295 = vmatprep.subr.mxu0 0.0
          %2296 = vmatpush1.msra.mxu0 0.0
          %2297 = vmatprep.subr.mxu0 0.0
          %2298 = vmatpush1.msra.mxu0 0.0
          %2299 = vmatprep.subr.mxu0 0.0
          %2300 = vmatpush1.msra.mxu0 0.0
          %2301 = vmatprep.subr.mxu0 0.0
          %2302 = vmatpush1.msra.mxu0 0.0
          %2303 = vmatprep.subr.mxu0 0.0
          %2304 = vmatpush1.msra.mxu0 0.0
          %2305 = vmatprep.subr.mxu0 0.0
          %2306 = vmatpush1.msra.mxu0 0.0
          %2307 = vmatprep.subr.mxu0 0.0
          %2308 = vmatpush1.msra.mxu0 0.0
          %2309 = vmatprep.subr.mxu0 0.0
          %2310 = vmatpush1.msra.mxu0 0.0
          %2311 = vmatprep.subr.mxu0 0.0
          %2312 = vmatpush1.msra.mxu0 0.0
          %2313 = vmatprep.subr.mxu0 0.0
          %2314 = vmatpush1.msra.mxu0 0.0
          %2315 = vmatprep.subr.mxu0 0.0
          %2316 = vmatpush1.msra.mxu0 0.0
          %2317 = vmatprep.subr.mxu0 0.0
          %2318 = vmatpush1.msra.mxu0 0.0
          %2319 = vmatprep.subr.mxu0 0.0
          %2320 = vmatpush1.msra.mxu0 0.0
          %2321 = vmatprep.subr.mxu0 0.0
          %2322 = vmatpush1.msra.mxu0 0.0
          %2323 = vmatprep.subr.mxu0 0.0
          %2324 = vmatpush1.msra.mxu0 0.0
          %2325 = vmatprep.subr.mxu0 0.0
          %2326 = vmatpush1.msra.mxu0 0.0
          %2327 = vmatprep.subr.mxu0 0.0
          %2328 = vmatpush1.msra.mxu0 0.0
          %2329 = vmatprep.subr.mxu0 0.0
          %2330 = vmatpush1.msra.mxu0 0.0
          %2331 = vmatprep.subr.mxu0 0.0
          %2332 = vmatpush1.msra.mxu0 0.0
          %2333 = vmatprep.subr.mxu0 0.0
          %2334 = vmatpush1.msra.mxu0 0.0
          %2335 = vmatprep.subr.mxu0 0.0
          %2336 = vmatpush1.msra.mxu0 0.0
          %2337 = vmatprep.subr.mxu0 0.0
          %2338 = vmatpush1.msra.mxu0 0.0
          %2339 = vmatprep.subr.mxu0 0.0
          %2340 = vmatpush1.msra.mxu0 0.0
          %2341 = vmatprep.subr.mxu0 0.0
          %2342 = vmatpush1.msra.mxu0 0.0
          %2343 = vmatprep.subr.mxu0 0.0
          %2344 = vmatpush1.msra.mxu0 0.0
          %2345 = vmatprep.subr.mxu0 0.0
          %2346 = vmatpush1.msra.mxu0 0.0
          %2347 = vmatprep.subr.mxu0 0.0
          %2348 = vmatpush1.msra.mxu0 0.0
          %2349 = vmatprep.subr.mxu0 0.0
          %2350 = vmatpush1.msra.mxu0 0.0
          %2351 = vmatprep.mubr.f32.mxu0 0.0
          %2352 = vmatmul.mubr.f32.gmra.mrb[0].mxu0 %v2285
          %v2353 = vpop.f32.mrb[0].mxu0
          %v2354 = vadd.f32 %v2283, %v2353
          %v2355 = vpop.f32.mrb[0].mxu0
          %2356 = vdwg.mxu0
          %2357 = vst [vmem:[%s296] sm:$0x1] %v2354
        $region52: #{tpu_custom_call.1} parent=43 // pred_fallthru
          _
        %s2358 = sand.u32 %s178, 1
        %s2359 = scalar_lea.sflag [#allocation5], %s2358
        %s2360 = sand.u32 %s178, 1
        %s2361 = scalar_lea.vmem [#allocation4], %s2360
        %s2362 = sand.u32 %s204, 1
        %s2363 = scalar_lea.sflag [#allocation7], %s2362
        %s2364 = sand.u32 %s204, 1
        %s2365 = scalar_lea.vmem [#allocation6], %s2364
        // Predicated region
        $region53: #{tpu_custom_call.1} parent=43 // pred_check
          %p2366 = pneg %p188
        $region54: #{tpu_custom_call.1} parent=43 // pred_check_branch
          %2368 = sbr.rel (%p2366) target = $region56
        $region55: #{tpu_custom_call.1} parent=43 // pred_region
          %s2370 = ssub.s32 16, 16
          %2371 = vsyncadd %s2359, %s2370
          %s2372 = smul.addr %s29, 16
          %s2373 = scalar_lea.hbm %s6, %s2372
          %s2375 = sshll.u32 %s2361, 4
          %s2376 = int_to_ptr.vmem [resolvable:$true] %s2375
          %2378 = dma.vmem_to_hbm [thread:$0]  %s2376, 16, %s2373, %s2359
        $region56: #{tpu_custom_call.1} parent=43 // pred_fallthru
          _
        // Predicated region
        $region57: #{tpu_custom_call.1} parent=43 // pred_check
          %p2379 = pneg %p214
        $region58: #{tpu_custom_call.1} parent=43 // pred_check_branch
          %2381 = sbr.rel (%p2379) target = $region60
        $region59: #{tpu_custom_call.1} parent=43 // pred_region
          %s2383 = ssub.s32 16, 16
          %2384 = vsyncadd %s2363, %s2383
          %s2385 = smul.addr %s29, 16
          %s2386 = scalar_lea.hbm %s7, %s2385
          %s2388 = sshll.u32 %s2365, 4
          %s2389 = int_to_ptr.vmem [resolvable:$true] %s2388
          %2391 = dma.vmem_to_hbm [thread:$0]  %s2389, 16, %s2386, %s2363
        $region60: #{tpu_custom_call.1} parent=43 // pred_fallthru
          _
      $region44: #{tpu_custom_call.1} parent=5 // pred_fallthru
        _
      %p2392 = scmp.le.s32.totalorder 2, %s20
      // Predicated region
      $region61: #{tpu_custom_call.1} parent=5 // pred_check
        %p2393 = pneg %p2392
      $region62: #{tpu_custom_call.1} parent=5 // pred_check_branch
        %2395 = sbr.rel (%p2393) target = $region64
      $region63: #{tpu_custom_call.1} parent=5 // pred_region
        %s2396 = ssub.s32 %s20, 2
        // Predicated region
        $region65: #{tpu_custom_call.1} parent=63 // pred_check
          %p2397 = pneg %p194
        $region66: #{tpu_custom_call.1} parent=63 // pred_check_branch
          %2399 = sbr.rel (%p2397) target = $region68
        $region67: #{tpu_custom_call.1} parent=63 // pred_region
          %s2400 = sand.u32 %s179, 1
          %s2401 = scalar_lea.sflag [#allocation5], %s2400
          %s2402 = sand.u32 %s179, 1
          %s2403 = scalar_lea.vmem [#allocation4], %s2402
          %2404 = dma.done %s2401, 16
        $region68: #{tpu_custom_call.1} parent=63 // pred_fallthru
          _
        // Predicated region
        $region69: #{tpu_custom_call.1} parent=63 // pred_check
          %p2405 = pneg %p220
        $region70: #{tpu_custom_call.1} parent=63 // pred_check_branch
          %2407 = sbr.rel (%p2405) target = $region72
        $region71: #{tpu_custom_call.1} parent=63 // pred_region
          %s2408 = sand.u32 %s205, 1
          %s2409 = scalar_lea.sflag [#allocation7], %s2408
          %s2410 = sand.u32 %s205, 1
          %s2411 = scalar_lea.vmem [#allocation6], %s2410
          %2412 = dma.done %s2409, 16
        $region72: #{tpu_custom_call.1} parent=63 // pred_fallthru
          _
      $region64: #{tpu_custom_call.1} parent=5 // pred_fallthru
        _
    $region6: #{tpu_custom_call.1} parent=1 // loop_footer
      %s24 = sadd.s32 1, %s20
    $region7: #{tpu_custom_call.1} parent=1 // loop_footer_branch
      %19 = sbr.rel target = $region3
    $region8: #{tpu_custom_call.1} parent=1 // loop_exit
      _
    %2413 = vsyncpa [#allocation5], 1
    %s2414 = scalar_lea.sflag [#allocation5], 1
    %2415 = vsyncpa %s2414, 1
    %2416 = vsyncpa [#allocation7], 1
    %s2417 = scalar_lea.sflag [#allocation7], 1
    %2418 = vsyncpa %s2417, 1

</llo_original>
